<compile_context>
chip_gen: v7x
topology: tpu7x:2x2x1
jax: 0.10.0
libtpu: 0.0.40
codegen_flags: <defaults>
</compile_context>

<pallas_src>
import functools
import math

import jax
import jax.numpy as jnp
from jax.experimental import pallas as pl
from jax.experimental.pallas import tpu as pltpu


def _round_up(n, k):
    return ((n + k - 1) // k) * k


def _spec(shape, index_map, *, buffers=None):
    """BlockSpec with an optional explicit buffer count (graceful fallback)."""
    if buffers is None:
        return pl.BlockSpec(shape, index_map)
    try:
        return pl.BlockSpec(shape, index_map, pipeline_mode=pl.Buffered(buffers))
    except TypeError:
        # Older Pallas without pipeline_mode: fall back to default buffering.
        return pl.BlockSpec(shape, index_map)


def _vmem_limit_bytes():
    """~85% of this generation's physical VMEM (v5e/v6e 128 MiB, v7x 64 MiB)."""
    try:
        cap = int(pltpu.get_tpu_info().vmem_capacity_bytes)
        return int(cap * 0.85)
    except Exception:
        return 64 * 1024 * 1024


def _slr_kernel(x_ref, wlin_ref, wd_ref, wu_ref, b_ref, bd_ref, o_ref, h_ref):
    """One (row-tile, out-column-tile) step of the SLR forward.

    x_ref    : (tm, in_dim)       activation rows (compute dtype)
    wlin_ref : (in_dim, tn)       scaler-folded base-linear weight column tile
    wd_ref   : (in_dim, hidden)   scaler-folded down projection (grid-invariant)
    wu_ref   : (hidden, tn)       scaler-folded up projection column tile
    b_ref    : (1, tn)            (b + bu) * out_scaler  (f32)
    bd_ref   : (1, hidden)        bd                      (f32)
    o_ref    : (tm, tn)           output tile
    h_ref    : (tm, hidden)       VMEM scratch, persists across the column axis
    """
    prec = jax.lax.Precision.HIGHEST if x_ref.dtype == jnp.float32 else None

    # Down projection: compute once per row tile, reuse for every column tile.
    @pl.when(pl.program_id(1) == 0)
    def _():
        h = jnp.dot(x_ref[...], wd_ref[...],
                    preferred_element_type=jnp.float32, precision=prec)
        h_ref[...] = (h + bd_ref[...]).astype(h_ref.dtype)

    # Base linear and up projection share the output-column tile; f32 accumulate.
    x_lin = jnp.dot(x_ref[...], wlin_ref[...],
                    preferred_element_type=jnp.float32, precision=prec)
    x_lr = jnp.dot(h_ref[...], wu_ref[...],
                   preferred_element_type=jnp.float32, precision=prec)
    o_ref[...] = (x_lin + b_ref[...] + x_lr).astype(o_ref.dtype)


def prepare_params(params, compute_dtype=None):
    """One-time (frozen-weight) fold of scalers/biases + transposes.

    Do this once and reuse the result every forward call; it is deliberately
    outside the hot path. Biases stay f32 even when compute_dtype=bf16.
    """
    f32 = jnp.float32
    w = params["linear_w"].astype(f32)        # (out, in)   torch convention
    b = params["linear_b"].astype(f32)        # (out,)
    wd = params["down_w"].astype(f32)         # (hidden, in)
    bd = params["down_b"].astype(f32)         # (hidden,)
    wu = params["up_w"].astype(f32)           # (out, hidden)
    bu = params["up_b"].astype(f32)           # (out,)
    in_s = params["in_scaler"].astype(f32)    # (in,)
    out_s = params["out_scaler"].astype(f32)  # (out,)

    w_lin = (in_s[:, None] * w.T) * out_s[None, :]   # (in, out)
    w_down = in_s[:, None] * wd.T                     # (in, hidden)
    w_up = wu.T * out_s[None, :]                      # (hidden, out)
    b_lin = ((b + bu) * out_s)[None, :]                # (1, out)  f32
    b_down = bd[None, :]                               # (1, hidden) f32

    if compute_dtype is not None:                      # e.g. bf16 MXU path
        w_lin = w_lin.astype(compute_dtype)
        w_down = w_down.astype(compute_dtype)
        w_up = w_up.astype(compute_dtype)

    return dict(w_lin=w_lin, w_down=w_down, w_up=w_up,
                b_lin=b_lin, b_down=b_down)


@functools.partial(jax.jit, static_argnames=("tm", "tn"))
def slr_adapter_forward(x, prep, *, tm=None, tn=512):
    """x: (..., in_dim) -> (..., out_dim) using the pre-folded params."""
    w_lin, w_down, w_up = prep["w_lin"], prep["w_down"], prep["w_up"]
    b_lin, b_down = prep["b_lin"], prep["b_down"]
    in_dim, out_dim = w_lin.shape
    hidden = w_down.shape[1]

    out_dtype = x.dtype
    lead = x.shape[:-1]
    m = math.prod(lead) if lead else 1
    x2 = x.reshape(m, in_dim)

    # Run the MXU in the weights' dtype; a mixed f32-x * bf16-W dot would
    # silently promote the weights back to f32.
    compute_dtype = w_lin.dtype
    if x2.dtype != compute_dtype:
        x2 = x2.astype(compute_dtype)

    vmem_limit = _vmem_limit_bytes()
    if tm is None:
        tm = 512 if vmem_limit >= 96 * 1024 * 1024 else 256

    # Sublane pack: f32 -> 8, bf16 -> 16, int8 -> 32 (cover input and output).
    sub = max((8 * 4) // jnp.dtype(compute_dtype).itemsize,
              (8 * 4) // jnp.dtype(out_dtype).itemsize)
    tm_eff = max(sub, min(_round_up(tm, sub), _round_up(m, sub)))
    n_row = pl.cdiv(m, tm_eff)
    # Keep >= 2 row tiles when possible so a "parallel" row axis can shard
    # across both TensorCores on 2-TC chips (v7x); harmless elsewhere.
    if n_row == 1 and m > sub:
        tm_eff = _round_up(pl.cdiv(m, 2), sub)
        n_row = pl.cdiv(m, tm_eff)

    # Output-column tiling bounds resident weights to in_dim * tn, so large
    # out_dim never has to be fully VMEM resident.
    if out_dim <= tn:
        tn_eff = out_dim                       # single, full-width column tile
    else:
        tn_eff = max(128, (tn // 128) * 128)   # lane-aligned column tile
    n_col = pl.cdiv(out_dim, tn_eff)

    # Grid-invariant operands -> single buffer (double-buffering a block whose
    # index never changes only wastes VMEM). Column-tiled weights keep the
    # default double buffer so the next tile's DMA overlaps compute.
    w_bufs = 1 if n_col == 1 else None

    itemsize = jnp.dtype(compute_dtype).itemsize
    cost = pl.CostEstimate(
        flops=2 * m * in_dim * (out_dim + hidden) + 2 * m * hidden * out_dim,
        transcendentals=0,
        bytes_accessed=(m * in_dim * itemsize
                        + (w_lin.size + w_down.size + w_up.size) * itemsize
                        + (b_lin.size + b_down.size) * 4
                        + m * out_dim * jnp.dtype(out_dtype).itemsize),
    )

    out2 = pl.pallas_call(
        _slr_kernel,
        out_shape=jax.ShapeDtypeStruct((m, out_dim), out_dtype),
        grid_spec=pltpu.PrefetchScalarGridSpec(
            num_scalar_prefetch=0,
            grid=(n_row, n_col),
            in_specs=[
                _spec((tm_eff, in_dim), lambda i, n: (i, 0)),              # x
                _spec((in_dim, tn_eff), lambda i, n: (0, n), buffers=w_bufs),
                _spec((in_dim, hidden), lambda i, n: (0, 0), buffers=1),   # Wd'
                _spec((hidden, tn_eff), lambda i, n: (0, n), buffers=w_bufs),
                _spec((1, tn_eff), lambda i, n: (0, n), buffers=w_bufs),   # b'
                _spec((1, hidden), lambda i, n: (0, 0), buffers=1),        # bd
            ],
            out_specs=pl.BlockSpec((tm_eff, tn_eff), lambda i, n: (i, n)),
            scratch_shapes=[pltpu.VMEM((tm_eff, hidden), compute_dtype)],
        ),
        compiler_params=pltpu.CompilerParams(
            dimension_semantics=("parallel", "arbitrary"),
            vmem_limit_bytes=vmem_limit,
        ),
        cost_estimate=cost,
    )(x2, w_lin, w_down, w_up, b_lin, b_down)

    return out2.reshape(*lead, out_dim)


def init_params(key, in_dim, out_dim, hidden_dim):
    """Deterministic synthetic init mirroring the module's __init__."""
    k_lw, k_lb, k_dw, k_db = jax.random.split(key, 4)
    bound = 1.0 / jnp.sqrt(in_dim)
    linear_w = jax.random.uniform(k_lw, (out_dim, in_dim), jnp.float32,
                                  -bound, bound)
    linear_b = jax.random.uniform(k_lb, (out_dim,), jnp.float32, -bound, bound)
    in_scaler = jnp.ones((in_dim,), jnp.float32)
    out_scaler = jnp.ones((out_dim,), jnp.float32)
    down_w = jax.random.normal(k_dw, (hidden_dim, in_dim), jnp.float32)
    down_b = jax.random.uniform(k_db, (hidden_dim,), jnp.float32,
                                -bound, bound)
    up_w = jnp.zeros((out_dim, hidden_dim), jnp.float32)
    up_b = jnp.zeros((out_dim,), jnp.float32)
    return dict(linear_w=linear_w, linear_b=linear_b,
                in_scaler=in_scaler, out_scaler=out_scaler,
                down_w=down_w, down_b=down_b, up_w=up_w, up_b=up_b)


def slr_reference(x, p):
    """Pure-JAX reference of the PyTorch forward (unfolded form)."""
    hi = jax.lax.Precision.HIGHEST
    xs = x * p["in_scaler"]
    h = jnp.dot(xs, p["down_w"].T, precision=hi) + p["down_b"]
    x_lr = jnp.dot(h, p["up_w"].T, precision=hi) + p["up_b"]
    x_lin = jnp.dot(xs, p["linear_w"].T, precision=hi) + p["linear_b"]
    return (x_lin + x_lr) * p["out_scaler"]


if __name__ == "__main__":
    def run_case(key, batch, seq, in_dim, out_dim, hidden_dim,
                 compute_dtype=None, tm=None, tn=512, tol=2e-4):
        kx, kp, ks = jax.random.split(key, 3)
        x = jax.random.normal(kx, (batch, seq, in_dim), jnp.float32)
        params = init_params(kp, in_dim, out_dim, hidden_dim)
        # Non-trivial scalers / up projection so the full path is exercised.
        params["in_scaler"] = params["in_scaler"] * 1.5
        params["out_scaler"] = params["out_scaler"] * 0.75
        params["up_w"] = 0.01 * jax.random.normal(
            ks, (out_dim, hidden_dim), jnp.float32)

        prep = prepare_params(params, compute_dtype=compute_dtype)
        out = slr_adapter_forward(x, prep, tm=tm, tn=tn)
        out = jax.block_until_ready(out)

        ref = slr_reference(x, params)
        assert out.shape == ref.shape
        assert jnp.allclose(out, ref, atol=tol, rtol=tol), "mismatch vs reference"

    key = jax.random.PRNGKey(0)
    k1, k2, k3 = jax.random.split(key, 3)

    # Small shapes consistent with the module (hidden_dim default-ish = 16).
    run_case(k1, batch=2, seq=8, in_dim=32, out_dim=32, hidden_dim=16)

    # Multi-tile grid: rows not divisible by tm, out_dim not a 128-multiple ->
    # exercises (row, column) tiling and Pallas edge-block masking.
    run_case(k2, batch=3, seq=25, in_dim=384, out_dim=320, hidden_dim=16,
             tm=32, tn=256)

    # bf16 MXU path (scalers quantized into bf16 weights -> looser tolerance).
    run_case(k3, batch=2, seq=8, in_dim=32, out_dim=32, hidden_dim=16,
             compute_dtype=jnp.bfloat16, tol=5e-2)

    print("KERNEL_OK")
</pallas_src>

<mosaic_0001>
module attributes {stable_mosaic.version = 11 : i64} {
  func.func @_slr_kernel(%arg0: i32, %arg1: i32, %arg2: memref<8x32xf32, #tpu.memory_space<vmem>>, %arg3: memref<32x32xf32, #tpu.memory_space<vmem>>, %arg4: memref<32x16xf32, #tpu.memory_space<vmem>>, %arg5: memref<16x32xf32, #tpu.memory_space<vmem>>, %arg6: memref<1x32xf32, #tpu.memory_space<vmem>>, %arg7: memref<1x16xf32, #tpu.memory_space<vmem>>, %arg8: memref<8x32xf32, #tpu.memory_space<vmem>>, %arg9: memref<8x16xf32, #tpu.memory_space<vmem>>) attributes {dimension_semantics = [#tpu.dimension_semantics<parallel>, #tpu.dimension_semantics<arbitrary>], iteration_bounds = array<i64: 2, 1>, scalar_prefetch = 0 : i64, scratch_operands = 1 : i64, tpu.core_type = #tpu.core_type<tc>, window_params = [{transform_indices = @transform_0, window_bounds = array<i64: 8, 32>}, {pipeline_mode = #tpu.pipeline_mode<synchronous>, transform_indices = @transform_1, window_bounds = array<i64: 32, 32>}, {pipeline_mode = #tpu.pipeline_mode<synchronous>, transform_indices = @transform_2, window_bounds = array<i64: 32, 16>}, {pipeline_mode = #tpu.pipeline_mode<synchronous>, transform_indices = @transform_3, window_bounds = array<i64: 16, 32>}, {pipeline_mode = #tpu.pipeline_mode<synchronous>, transform_indices = @transform_4, window_bounds = array<i64: 1, 32>}, {pipeline_mode = #tpu.pipeline_mode<synchronous>, transform_indices = @transform_5, window_bounds = array<i64: 1, 16>}, {transform_indices = @transform_6, window_bounds = array<i64: 8, 32>}]} {
    %c0_i32 = arith.constant 0 : i32
    %0 = arith.cmpi eq, %arg1, %c0_i32 : i32
    %1 = arith.extui %0 : i1 to i32
    %c0_i32_0 = arith.constant 0 : i32
    %2 = arith.cmpi ne, %1, %c0_i32_0 : i32
    scf.if %2 {
      %c0_13 = arith.constant 0 : index
      %c0_14 = arith.constant 0 : index
      %14 = vector.load %arg2[%c0_13, %c0_14] : memref<8x32xf32, #tpu.memory_space<vmem>>, vector<8x32xf32>
      %c0_15 = arith.constant 0 : index
      %c0_16 = arith.constant 0 : index
      %15 = vector.load %arg4[%c0_15, %c0_16] : memref<32x16xf32, #tpu.memory_space<vmem>>, vector<32x16xf32>
      %cst_17 = arith.constant dense<0.000000e+00> : vector<8x16xf32>
      %16 = tpu.matmul %14, %15, %cst_17 {dimension_numbers = #tpu.dot_dimension_numbers<[1], [0], [0], [1], [0, 0, 1, 1], [], []>, precision = #tpu.contract_precision<fp32>} : vector<8x32xf32>, vector<32x16xf32>, vector<8x16xf32> -> vector<8x16xf32>
      %c0_18 = arith.constant 0 : index
      %c0_19 = arith.constant 0 : index
      %17 = vector.load %arg7[%c0_18, %c0_19] : memref<1x16xf32, #tpu.memory_space<vmem>>, vector<1x16xf32>
      %18 = vector.broadcast %17 : vector<1x16xf32> to vector<8x16xf32>
      %19 = arith.addf %16, %18 : vector<8x16xf32>
      %c0_20 = arith.constant 0 : index
      %c0_21 = arith.constant 0 : index
      %20 = vector.load %arg9[%c0_20, %c0_21] : memref<8x16xf32, #tpu.memory_space<vmem>>, vector<8x16xf32>
      tpu.vector_store %arg9[%c0_20, %c0_21], %19 {strides = array<i32>} : memref<8x16xf32, #tpu.memory_space<vmem>>, vector<8x16xf32>,
    } else {
    }
    %c0 = arith.constant 0 : index
    %c0_1 = arith.constant 0 : index
    %3 = vector.load %arg2[%c0, %c0_1] : memref<8x32xf32, #tpu.memory_space<vmem>>, vector<8x32xf32>
    %c0_2 = arith.constant 0 : index
    %c0_3 = arith.constant 0 : index
    %4 = vector.load %arg3[%c0_2, %c0_3] : memref<32x32xf32, #tpu.memory_space<vmem>>, vector<32x32xf32>
    %cst = arith.constant dense<0.000000e+00> : vector<8x32xf32>
    %5 = tpu.matmul %3, %4, %cst {dimension_numbers = #tpu.dot_dimension_numbers<[1], [0], [0], [1], [0, 0, 1, 1], [], []>, precision = #tpu.contract_precision<fp32>} : vector<8x32xf32>, vector<32x32xf32>, vector<8x32xf32> -> vector<8x32xf32>
    %c0_4 = arith.constant 0 : index
    %c0_5 = arith.constant 0 : index
    %6 = vector.load %arg9[%c0_4, %c0_5] : memref<8x16xf32, #tpu.memory_space<vmem>>, vector<8x16xf32>
    %c0_6 = arith.constant 0 : index
    %c0_7 = arith.constant 0 : index
    %7 = vector.load %arg5[%c0_6, %c0_7] : memref<16x32xf32, #tpu.memory_space<vmem>>, vector<16x32xf32>
    %cst_8 = arith.constant dense<0.000000e+00> : vector<8x32xf32>
    %8 = tpu.matmul %6, %7, %cst_8 {dimension_numbers = #tpu.dot_dimension_numbers<[1], [0], [0], [1], [0, 0, 1, 1], [], []>, precision = #tpu.contract_precision<fp32>} : vector<8x16xf32>, vector<16x32xf32>, vector<8x32xf32> -> vector<8x32xf32>
    %c0_9 = arith.constant 0 : index
    %c0_10 = arith.constant 0 : index
    %9 = vector.load %arg6[%c0_9, %c0_10] : memref<1x32xf32, #tpu.memory_space<vmem>>, vector<1x32xf32>
    %10 = vector.broadcast %9 : vector<1x32xf32> to vector<8x32xf32>
    %11 = arith.addf %5, %10 : vector<8x32xf32>
    %12 = arith.addf %11, %8 : vector<8x32xf32>
    %c0_11 = arith.constant 0 : index
    %c0_12 = arith.constant 0 : index
    %13 = vector.load %arg8[%c0_11, %c0_12] : memref<8x32xf32, #tpu.memory_space<vmem>>, vector<8x32xf32>
    tpu.vector_store %arg8[%c0_11, %c0_12], %12 {strides = array<i32>} : memref<8x32xf32, #tpu.memory_space<vmem>>, vector<8x32xf32>,
    return
  }
  func.func @transform_0(%arg0: i32, %arg1: i32) -> (i32, i32) {
    %c0_i32 = arith.constant 0 : i32
    %c0_i32_0 = arith.constant 0 : i32
    return %arg0, %c0_i32 : i32, i32
  }
  func.func @transform_1(%arg0: i32, %arg1: i32) -> (i32, i32) {
    %c0_i32 = arith.constant 0 : i32
    %c0_i32_0 = arith.constant 0 : i32
    return %c0_i32, %arg1 : i32, i32
  }
  func.func @transform_2(%arg0: i32, %arg1: i32) -> (i32, i32) {
    %c0_i32 = arith.constant 0 : i32
    %c0_i32_0 = arith.constant 0 : i32
    %c0_i32_1 = arith.constant 0 : i32
    return %c0_i32, %c0_i32_0 : i32, i32
  }
  func.func @transform_3(%arg0: i32, %arg1: i32) -> (i32, i32) {
    %c0_i32 = arith.constant 0 : i32
    %c0_i32_0 = arith.constant 0 : i32
    return %c0_i32, %arg1 : i32, i32
  }
  func.func @transform_4(%arg0: i32, %arg1: i32) -> (i32, i32) {
    %c0_i32 = arith.constant 0 : i32
    %c0_i32_0 = arith.constant 0 : i32
    return %c0_i32, %arg1 : i32, i32
  }
  func.func @transform_5(%arg0: i32, %arg1: i32) -> (i32, i32) {
    %c0_i32 = arith.constant 0 : i32
    %c0_i32_0 = arith.constant 0 : i32
    %c0_i32_1 = arith.constant 0 : i32
    return %c0_i32, %c0_i32_0 : i32, i32
  }
  func.func @transform_6(%arg0: i32, %arg1: i32) -> (i32, i32) {
    %c0_i32 = arith.constant 0 : i32
    return %arg0, %arg1 : i32, i32
  }
}

</mosaic_0001>

<llo_original>
// kernel: slr_adapter_forward.1
$region0: #{slr_adapter_forward.1}
  #allocation0 [shape = 'u32[]', space=smem, size = 0x4, offset = 0x4, fixed_abs, tag = 'smem constant byte address 0x4 - core index']
  #allocation1 [shape = 'u32[144,128]{1,0:T(1,128)}', space=vmem, size = 0x12000, scoped, tag = 'internal scratch']
  #allocation2 [shape = 'f32[8,16]{1,0:T(8,128)}', space=vmem, size = 0x1000, scoped, tag = 'scratch operand']
  %s0 = inlined_call_operand.hbm [shape: f32[16,32], index: 0, kind: input, shape index: {}]
  %s1 = inlined_call_operand.hbm [shape: f32[32,32], index: 1, kind: input, shape index: {}]
  %s2 = inlined_call_operand.hbm [shape: f32[32,16], index: 2, kind: input, shape index: {}]
  %s3 = inlined_call_operand.hbm [shape: f32[16,32], index: 3, kind: input, shape index: {}]
  %s4 = inlined_call_operand.hbm [shape: f32[1,32], index: 4, kind: input, shape index: {}]
  %s5 = inlined_call_operand.hbm [shape: f32[1,16], index: 5, kind: input, shape index: {}]
  %s6 = inlined_call_operand.hbm [shape: f32[16,32], index: 6, kind: output, shape index: {}]
  %s7 = sld [smem:[#allocation0]]
  $region85: #{slr_adapter_forward.1} parent=0
    _
  %s9 = ssub.s32 1, %s7
  %s10 = scalar_select 0, %s9, %s7
  $region1: #{slr_adapter_forward.1} parent=0
    #allocation3 [shape = 'u8[8192]{0}', space=vmem, size = 0x2000, scoped, tag = 'input window, operand 0']
    #allocation4 [shape = 's32[2]{0}', space=sflag, size = 0x8, scoped, tag = 'scoped memory for slr_adapter_forward.1']
    #allocation5 [shape = 's32[2]{0}', space=sflag, size = 0x8, scoped, tag = 'scoped memory for slr_adapter_forward.1']
    #allocation6 [shape = 'u8[16384]{0}', space=vmem, size = 0x4000, scoped, tag = 'input window, operand 1, single buffered']
    #allocation7 [shape = 's32[1]{0}', space=sflag, size = 0x4, scoped, tag = 'scoped memory for slr_adapter_forward.1']
    #allocation8 [shape = 'u8[16384]{0}', space=vmem, size = 0x4000, scoped, tag = 'input window, operand 2, single buffered']
    #allocation9 [shape = 'u8[8192]{0}', space=vmem, size = 0x2000, scoped, tag = 'input window, operand 3, single buffered']
    #allocation10 [shape = 's32[1]{0}', space=sflag, size = 0x4, scoped, tag = 'scoped memory for slr_adapter_forward.1']
    #allocation11 [shape = 'u8[512]{0}', space=vmem, size = 0x400, scoped, tag = 'input window, operand 4, single buffered']
    #allocation12 [shape = 'u8[512]{0}', space=vmem, size = 0x400, scoped, tag = 'input window, operand 5, single buffered']
    #allocation13 [shape = 's32[1]{0}', space=sflag, size = 0x4, scoped, tag = 'scoped memory for slr_adapter_forward.1']
    #allocation14 [shape = 'u8[8192]{0}', space=vmem, size = 0x2000, scoped, tag = 'output window, operand 0']
    %11 = vsyncpa [#allocation4], 0
    %s12 = scalar_lea.sflag [#allocation4], 1
    %13 = vsyncpa %s12, 0
    %14 = vsyncpa [#allocation7], 0
    %15 = vsyncpa [#allocation10], 0
    %16 = vsyncpa [#allocation13], 0
    %17 = vsyncpa [#allocation5], 0
    %s18 = scalar_lea.sflag [#allocation5], 1
    %19 = vsyncpa %s18, 0
    loop: start=0, step=1, limit=4
    $region2: #{slr_adapter_forward.1} parent=1 // loop_pre_header
      _
    $region3: #{slr_adapter_forward.1} parent=1 // loop_header
      %s21 = sphi 0, %s25
      %p22 = scmp.ge.s32.totalorder %s21, 4
      %s28 = sphi 0, %s40
      %s29 = sphi 0, %s36
      %s30 = sphi 0, %s28
      %s31 = sphi 0, %s29
      %s32 = sphi 0, %s30
      %s33 = sphi 0, %s31
      %s43 = sphi 0, %s45
      %s46 = sphi 0, %s43
      %s47 = sphi 0, %s46
      %s63 = sphi 0, %s47
      %s69 = sphi 0, %s71
      %s72 = sphi 0, %s69
      %s73 = sphi 0, %s72
      %s89 = sphi 0, %s73
      %s93 = sphi 0, %s93
      %s95 = sphi 0, %s93
      %s96 = sphi 0, %s95
      %s110 = sphi 0, %s96
      %s116 = sphi 0, %s118
      %s119 = sphi 0, %s116
      %s120 = sphi 0, %s119
      %s136 = sphi 0, %s120
      %s142 = sphi 0, %s144
      %s145 = sphi 0, %s142
      %s146 = sphi 0, %s145
      %s162 = sphi 0, %s146
      %s166 = sphi 0, %s166
      %s168 = sphi 0, %s166
      %s169 = sphi 0, %s168
      %s183 = sphi 0, %s169
      %s191 = sphi 0, %s193
      %s194 = sphi 0, %s191
      %s195 = sphi 0, %s194
      %s211 = sphi 0, %s195
    $region4: #{slr_adapter_forward.1} parent=1 // loop_header_branch
      %24 = sbr.rel (%p22) target = $region8
    $region5: #{slr_adapter_forward.1} parent=1 // loop_body
      %s26 = ssub.s32 %s21, 1
      %s27 = ssub.s32 %s21, 2
      %s34 = sadd.s32 1, %s29
      %p35 = scmp.ge.s32.totalorder %s34, 1
      %s36 = scalar_select %p35, 0, %s34
      %s37 = sadd.s32 1, %s28
      %s38 = scalar_select %p35, %s37, %s28
      %p39 = scmp.ge.s32.totalorder %s38, 2
      %s40 = scalar_select %p39, 0, %s38
      %s41 = ssub.s32 %s28, %s40
      %p42 = scmp.eq.s32.totalorder %s41, 0
      %s44 = sadd.s32 %s43, 1
      %s45 = scalar_select %p42, %s43, %s44
      %p48 = pneg %p42
      %p49 = scmp.eq.s32.totalorder %s21, 1
      %p50 = por %p48, %p49
      %p51 = scmp.ne.s32.totalorder %s43, %s46
      %p52 = scmp.eq.s32.totalorder %s21, 0
      %p53 = por %p51, %p52
      %p54 = scmp.ne.s32.totalorder %s43, %s46
      %p55 = scmp.eq.s32.totalorder %s26, 1
      %p56 = por %p54, %p55
      %p57 = scmp.ne.s32.totalorder %s46, %s47
      %p58 = scmp.eq.s32.totalorder %s26, 0
      %p59 = por %p57, %p58
      %p60 = scmp.ne.s32.totalorder %s46, %s47
      %p61 = scmp.eq.s32.totalorder %s27, 1
      %p62 = por %p60, %p61
      %p64 = scmp.ne.s32.totalorder %s47, %s63
      %p65 = scmp.eq.s32.totalorder %s27, 0
      %p66 = por %p64, %p65
      %s67 = ssub.s32 %s29, %s36
      %p68 = scmp.eq.s32.totalorder %s67, 0
      %s70 = sadd.s32 %s69, 1
      %s71 = scalar_select %p68, %s69, %s70
      %p74 = pneg %p68
      %p75 = scmp.eq.s32.totalorder %s21, 1
      %p76 = por %p74, %p75
      %p77 = scmp.ne.s32.totalorder %s69, %s72
      %p78 = scmp.eq.s32.totalorder %s21, 0
      %p79 = por %p77, %p78
      %p80 = scmp.ne.s32.totalorder %s69, %s72
      %p81 = scmp.eq.s32.totalorder %s26, 1
      %p82 = por %p80, %p81
      %p83 = scmp.ne.s32.totalorder %s72, %s73
      %p84 = scmp.eq.s32.totalorder %s26, 0
      %p85 = por %p83, %p84
      %p86 = scmp.ne.s32.totalorder %s72, %s73
      %p87 = scmp.eq.s32.totalorder %s27, 1
      %p88 = por %p86, %p87
      %p90 = scmp.ne.s32.totalorder %s73, %s89
      %p91 = scmp.eq.s32.totalorder %s27, 0
      %p92 = por %p90, %p91
      %s94 = sadd.s32 %s93, 1
      %p97 = scmp.eq.s32.totalorder %s21, 1
      %p98 = scmp.ne.s32.totalorder %s93, %s95
      %p99 = scmp.eq.s32.totalorder %s21, 0
      %p100 = por %p98, %p99
      %p101 = scmp.ne.s32.totalorder %s93, %s95
      %p102 = scmp.eq.s32.totalorder %s26, 1
      %p103 = por %p101, %p102
      %p104 = scmp.ne.s32.totalorder %s95, %s96
      %p105 = scmp.eq.s32.totalorder %s26, 0
      %p106 = por %p104, %p105
      %p107 = scmp.ne.s32.totalorder %s95, %s96
      %p108 = scmp.eq.s32.totalorder %s27, 1
      %p109 = por %p107, %p108
      %p111 = scmp.ne.s32.totalorder %s96, %s110
      %p112 = scmp.eq.s32.totalorder %s27, 0
      %p113 = por %p111, %p112
      %s114 = ssub.s32 %s29, %s36
      %p115 = scmp.eq.s32.totalorder %s114, 0
      %s117 = sadd.s32 %s116, 1
      %s118 = scalar_select %p115, %s116, %s117
      %p121 = pneg %p115
      %p122 = scmp.eq.s32.totalorder %s21, 1
      %p123 = por %p121, %p122
      %p124 = scmp.ne.s32.totalorder %s116, %s119
      %p125 = scmp.eq.s32.totalorder %s21, 0
      %p126 = por %p124, %p125
      %p127 = scmp.ne.s32.totalorder %s116, %s119
      %p128 = scmp.eq.s32.totalorder %s26, 1
      %p129 = por %p127, %p128
      %p130 = scmp.ne.s32.totalorder %s119, %s120
      %p131 = scmp.eq.s32.totalorder %s26, 0
      %p132 = por %p130, %p131
      %p133 = scmp.ne.s32.totalorder %s119, %s120
      %p134 = scmp.eq.s32.totalorder %s27, 1
      %p135 = por %p133, %p134
      %p137 = scmp.ne.s32.totalorder %s120, %s136
      %p138 = scmp.eq.s32.totalorder %s27, 0
      %p139 = por %p137, %p138
      %s140 = ssub.s32 %s29, %s36
      %p141 = scmp.eq.s32.totalorder %s140, 0
      %s143 = sadd.s32 %s142, 1
      %s144 = scalar_select %p141, %s142, %s143
      %p147 = pneg %p141
      %p148 = scmp.eq.s32.totalorder %s21, 1
      %p149 = por %p147, %p148
      %p150 = scmp.ne.s32.totalorder %s142, %s145
      %p151 = scmp.eq.s32.totalorder %s21, 0
      %p152 = por %p150, %p151
      %p153 = scmp.ne.s32.totalorder %s142, %s145
      %p154 = scmp.eq.s32.totalorder %s26, 1
      %p155 = por %p153, %p154
      %p156 = scmp.ne.s32.totalorder %s145, %s146
      %p157 = scmp.eq.s32.totalorder %s26, 0
      %p158 = por %p156, %p157
      %p159 = scmp.ne.s32.totalorder %s145, %s146
      %p160 = scmp.eq.s32.totalorder %s27, 1
      %p161 = por %p159, %p160
      %p163 = scmp.ne.s32.totalorder %s146, %s162
      %p164 = scmp.eq.s32.totalorder %s27, 0
      %p165 = por %p163, %p164
      %s167 = sadd.s32 %s166, 1
      %p170 = scmp.eq.s32.totalorder %s21, 1
      %p171 = scmp.ne.s32.totalorder %s166, %s168
      %p172 = scmp.eq.s32.totalorder %s21, 0
      %p173 = por %p171, %p172
      %p174 = scmp.ne.s32.totalorder %s166, %s168
      %p175 = scmp.eq.s32.totalorder %s26, 1
      %p176 = por %p174, %p175
      %p177 = scmp.ne.s32.totalorder %s168, %s169
      %p178 = scmp.eq.s32.totalorder %s26, 0
      %p179 = por %p177, %p178
      %p180 = scmp.ne.s32.totalorder %s168, %s169
      %p181 = scmp.eq.s32.totalorder %s27, 1
      %p182 = por %p180, %p181
      %p184 = scmp.ne.s32.totalorder %s169, %s183
      %p185 = scmp.eq.s32.totalorder %s27, 0
      %p186 = por %p184, %p185
      %s187 = ssub.s32 %s28, %s40
      %s188 = ssub.s32 %s29, %s36
      %s189 = sor.u32 %s187, %s188
      %p190 = scmp.eq.s32.totalorder %s189, 0
      %s192 = sadd.s32 %s191, 1
      %s193 = scalar_select %p190, %s191, %s192
      %p196 = pneg %p190
      %p197 = scmp.eq.s32.totalorder %s21, 1
      %p198 = por %p196, %p197
      %p199 = scmp.ne.s32.totalorder %s191, %s194
      %p200 = scmp.eq.s32.totalorder %s21, 0
      %p201 = por %p199, %p200
      %p202 = scmp.ne.s32.totalorder %s191, %s194
      %p203 = scmp.eq.s32.totalorder %s26, 1
      %p204 = por %p202, %p203
      %p205 = scmp.ne.s32.totalorder %s194, %s195
      %p206 = scmp.eq.s32.totalorder %s26, 0
      %p207 = por %p205, %p206
      %p208 = scmp.ne.s32.totalorder %s194, %s195
      %p209 = scmp.eq.s32.totalorder %s27, 1
      %p210 = por %p208, %p209
      %p212 = scmp.ne.s32.totalorder %s195, %s211
      %p213 = scmp.eq.s32.totalorder %s27, 0
      %p214 = por %p212, %p213
      %p215 = scmp.le.s32.totalorder 1, %s21
      %p216 = scmp.lt.s32.totalorder %s21, 3
      %p217 = pnand %p215, %p216
      %p218 = pneg %p217
      // Predicated region
      $region9: #{slr_adapter_forward.1} parent=5 // pred_check
        _
      $region10: #{slr_adapter_forward.1} parent=5 // pred_check_branch
        %220 = sbr.rel (%p217) target = $region12
      $region11: #{slr_adapter_forward.1} parent=5 // pred_region
        %s221 = ssub.s32 %s21, 1
        // Predicated region
        $region13: #{slr_adapter_forward.1} parent=11 // pred_check
          %p222 = pneg %p85
        $region14: #{slr_adapter_forward.1} parent=11 // pred_check_branch
          %224 = sbr.rel (%p222) target = $region16
        $region15: #{slr_adapter_forward.1} parent=11 // pred_region
          %s226 = ssub.s32 512, 512
          %227 = vsyncadd [#allocation7], %s226
          %s228 = smul.addr %s31, 128
          %s229 = scalar_lea.hbm %s1, %s228
          %s230 = sshll.u32 [#allocation6], 4
          %s231 = int_to_ptr.vmem [resolvable:$true] %s230
          %236 = dma.hbm_to_vmem [thread:$0]  %s229, 512, %s231, [#allocation7], 128, 128, 8
        $region16: #{slr_adapter_forward.1} parent=11 // pred_fallthru
          _
        // Predicated region
        $region17: #{slr_adapter_forward.1} parent=11 // pred_check
          %p237 = pneg %p106
        $region18: #{slr_adapter_forward.1} parent=11 // pred_check_branch
          %239 = sbr.rel (%p237) target = $region20
        $region19: #{slr_adapter_forward.1} parent=11 // pred_region
          %s241 = ssub.s32 512, 512
          %242 = vsyncadd [#allocation7], %s241
          %s243 = sshll.u32 [#allocation8], 4
          %s244 = int_to_ptr.vmem [resolvable:$true] %s243
          %249 = dma.hbm_to_vmem [thread:$0]  %s2, 512, %s244, [#allocation7], 128, 128, 8
        $region20: #{slr_adapter_forward.1} parent=11 // pred_fallthru
          _
        // Predicated region
        $region21: #{slr_adapter_forward.1} parent=11 // pred_check
          %p250 = pneg %p132
        $region22: #{slr_adapter_forward.1} parent=11 // pred_check_branch
          %252 = sbr.rel (%p250) target = $region24
        $region23: #{slr_adapter_forward.1} parent=11 // pred_region
          %s254 = ssub.s32 256, 256
          %255 = vsyncadd [#allocation10], %s254
          %s256 = smul.addr %s31, 128
          %s257 = scalar_lea.hbm %s3, %s256
          %s258 = sshll.u32 [#allocation9], 4
          %s259 = int_to_ptr.vmem [resolvable:$true] %s258
          %264 = dma.hbm_to_vmem [thread:$0]  %s257, 256, %s259, [#allocation10], 128, 128, 8
        $region24: #{slr_adapter_forward.1} parent=11 // pred_fallthru
          _
        // Predicated region
        $region25: #{slr_adapter_forward.1} parent=11 // pred_check
          %p265 = pneg %p158
        $region26: #{slr_adapter_forward.1} parent=11 // pred_check_branch
          %267 = sbr.rel (%p265) target = $region28
        $region27: #{slr_adapter_forward.1} parent=11 // pred_region
          %s269 = ssub.s32 16, 16
          %270 = vsyncadd [#allocation10], %s269
          %s271 = smul.addr %s31, 16
          %s272 = scalar_lea.hbm %s4, %s271
          %s274 = sshll.u32 [#allocation11], 4
          %s275 = int_to_ptr.vmem [resolvable:$true] %s274
          %277 = dma.hbm_to_vmem [thread:$0]  %s272, 16, %s275, [#allocation10]
        $region28: #{slr_adapter_forward.1} parent=11 // pred_fallthru
          _
        // Predicated region
        $region29: #{slr_adapter_forward.1} parent=11 // pred_check
          %p278 = pneg %p179
        $region30: #{slr_adapter_forward.1} parent=11 // pred_check_branch
          %280 = sbr.rel (%p278) target = $region32
        $region31: #{slr_adapter_forward.1} parent=11 // pred_region
          %s282 = ssub.s32 16, 16
          %283 = vsyncadd [#allocation13], %s282
          %s285 = sshll.u32 [#allocation12], 4
          %s286 = int_to_ptr.vmem [resolvable:$true] %s285
          %288 = dma.hbm_to_vmem [thread:$0]  %s5, 16, %s286, [#allocation13]
        $region32: #{slr_adapter_forward.1} parent=11 // pred_fallthru
          _
      $region12: #{slr_adapter_forward.1} parent=5 // pred_fallthru
        _
      %p289 = scmp.lt.s32.totalorder %s21, 2
      // Predicated region
      $region33: #{slr_adapter_forward.1} parent=5 // pred_check
        %p290 = pneg %p289
      $region34: #{slr_adapter_forward.1} parent=5 // pred_check_branch
        %292 = sbr.rel (%p290) target = $region36
      $region35: #{slr_adapter_forward.1} parent=5 // pred_region
        // Predicated region
        $region37: #{slr_adapter_forward.1} parent=35 // pred_check
          %p293 = pneg %p53
        $region38: #{slr_adapter_forward.1} parent=35 // pred_check_branch
          %295 = sbr.rel (%p293) target = $region40
        $region39: #{slr_adapter_forward.1} parent=35 // pred_region
          %s296 = sand.u32 %s43, 1
          %s297 = scalar_lea.sflag [#allocation4], %s296
          %s298 = sand.u32 %s43, 1
          %s299 = smul.addr %s298, 8
          %s300 = scalar_lea.vmem [#allocation3], %s299
          %s302 = ssub.s32 128, 128
          %303 = vsyncadd %s297, %s302
          %s304 = smul.addr %s28, 128
          %s305 = scalar_lea.hbm %s0, %s304
          %s307 = sshll.u32 %s300, 4
          %s308 = int_to_ptr.vmem [resolvable:$true] %s307
          %310 = dma.hbm_to_vmem [thread:$0]  %s305, 128, %s308, %s297
        $region40: #{slr_adapter_forward.1} parent=35 // pred_fallthru
          _
      $region36: #{slr_adapter_forward.1} parent=5 // pred_fallthru
        _
      %p311 = scmp.le.s32.totalorder 1, %s21
      %p312 = scmp.lt.s32.totalorder %s21, 3
      %p313 = pnand %p311, %p312
      %p314 = pneg %p313
      // Predicated region
      $region41: #{slr_adapter_forward.1} parent=5 // pred_check
        _
      $region42: #{slr_adapter_forward.1} parent=5 // pred_check_branch
        %316 = sbr.rel (%p313) target = $region44
      $region43: #{slr_adapter_forward.1} parent=5 // pred_region
        %s317 = ssub.s32 %s21, 1
        %s318 = sand.u32 %s46, 1
        %s319 = scalar_lea.sflag [#allocation4], %s318
        %s320 = sand.u32 %s46, 1
        %s321 = smul.addr %s320, 8
        %s322 = scalar_lea.vmem [#allocation3], %s321
        // Predicated region
        $region45: #{slr_adapter_forward.1} parent=43 // pred_check
          %p323 = pneg %p59
        $region46: #{slr_adapter_forward.1} parent=43 // pred_check_branch
          %325 = sbr.rel (%p323) target = $region48
        $region47: #{slr_adapter_forward.1} parent=43 // pred_region
          %326 = dma.done %s319, 128
        $region48: #{slr_adapter_forward.1} parent=43 // pred_fallthru
          _
        // Predicated region
        $region49: #{slr_adapter_forward.1} parent=43 // pred_check
          %p327 = pneg %p85
        $region50: #{slr_adapter_forward.1} parent=43 // pred_check_branch
          %329 = sbr.rel (%p327) target = $region52
        $region51: #{slr_adapter_forward.1} parent=43 // pred_region
          %330 = dma.done [#allocation7], 512
        $region52: #{slr_adapter_forward.1} parent=43 // pred_fallthru
          _
        // Predicated region
        $region53: #{slr_adapter_forward.1} parent=43 // pred_check
          %p331 = pneg %p106
        $region54: #{slr_adapter_forward.1} parent=43 // pred_check_branch
          %333 = sbr.rel (%p331) target = $region56
        $region55: #{slr_adapter_forward.1} parent=43 // pred_region
          %334 = dma.done [#allocation7], 512
        $region56: #{slr_adapter_forward.1} parent=43 // pred_fallthru
          _
        // Predicated region
        $region57: #{slr_adapter_forward.1} parent=43 // pred_check
          %p335 = pneg %p132
        $region58: #{slr_adapter_forward.1} parent=43 // pred_check_branch
          %337 = sbr.rel (%p335) target = $region60
        $region59: #{slr_adapter_forward.1} parent=43 // pred_region
          %338 = dma.done [#allocation10], 256
        $region60: #{slr_adapter_forward.1} parent=43 // pred_fallthru
          _
        // Predicated region
        $region61: #{slr_adapter_forward.1} parent=43 // pred_check
          %p339 = pneg %p158
        $region62: #{slr_adapter_forward.1} parent=43 // pred_check_branch
          %341 = sbr.rel (%p339) target = $region64
        $region63: #{slr_adapter_forward.1} parent=43 // pred_region
          %342 = dma.done [#allocation10], 16
        $region64: #{slr_adapter_forward.1} parent=43 // pred_fallthru
          _
        // Predicated region
        $region65: #{slr_adapter_forward.1} parent=43 // pred_check
          %p343 = pneg %p179
        $region66: #{slr_adapter_forward.1} parent=43 // pred_check_branch
          %345 = sbr.rel (%p343) target = $region68
        $region67: #{slr_adapter_forward.1} parent=43 // pred_region
          %346 = dma.done [#allocation13], 16
        $region68: #{slr_adapter_forward.1} parent=43 // pred_fallthru
          _
        %s347 = sand.u32 %s46, 1
        %s348 = scalar_lea.sflag [#allocation4], %s347
        %s349 = sand.u32 %s46, 1
        %s350 = smul.addr %s349, 8
        %s351 = scalar_lea.vmem [#allocation3], %s350
        %p352 = pneg %p59
        %p353 = pneg %p56
        %p354 = pneg %p85
        %p355 = pneg %p82
        %p356 = pneg %p106
        %p357 = pneg %p103
        %p358 = pneg %p132
        %p359 = pneg %p129
        %p360 = pneg %p158
        %p361 = pneg %p155
        %p362 = pneg %p179
        %p363 = pneg %p176
        %p364 = pneg %p207
        %p365 = pneg %p204
        %s366 = sand.u32 %s194, 1
        %s367 = scalar_lea.sflag [#allocation5], %s366
        %s368 = sand.u32 %s194, 1
        %s369 = smul.addr %s368, 8
        %s370 = scalar_lea.vmem [#allocation14], %s369
        %p371 = scmp.eq.s32.totalorder %s31, 0
        // Predicated region
        $region69: #{slr_adapter_forward.1} parent=43 // pred_check
          %p372 = pneg %p371
        $region70: #{slr_adapter_forward.1} parent=43 // pred_check_branch
          %374 = sbr.rel (%p372) target = $region72
        $region71: #{slr_adapter_forward.1} parent=43 // pred_region
          %v375 = vld [vmem:[%s322] sm:$0xff]
          %v376 = vld [vmem:[#allocation8] sm:$0xff]
          %v377 = vld [vmem:[#allocation8 + $0x8] sm:$0xff]
          %v378 = vld [vmem:[#allocation8 + $0x10] sm:$0xff]
          %v379 = vld [vmem:[#allocation8 + $0x18] sm:$0xff]
          %v380 = vld [vmem:[#allocation12] sm:$0x1]
          %v382 = vlaneseq
          %v383 = vshrl.u32 %v382, 7
          %v384 = vsub.s32 0, %v383
          %v385 = vrot.slane %v380, %v384
          %vm387 = vcmask 261120
          %v389 = vsel %vm387, %v375, 0
          %391 = vmatprep.subr.mxu0 0.0
          %v392 = vand.u32 %v376, 4294901760
          %393 = vmatpush1.msra.mxu0 %v392
          %394 = vmatprep.subr.mxu0 0.0
          %v395 = vand.u32 %v377, 4294901760
          %396 = vmatpush1.msra.mxu0 %v395
          %397 = vmatprep.subr.mxu0 0.0
          %v398 = vand.u32 %v378, 4294901760
          %399 = vmatpush1.msra.mxu0 %v398
          %400 = vmatprep.subr.mxu0 0.0
          %v401 = vand.u32 %v379, 4294901760
          %402 = vmatpush1.msra.mxu0 %v401
          %403 = vmatprep.subr.mxu0 0.0
          %404 = vmatpush1.msra.mxu0 0.0
          %405 = vmatprep.subr.mxu0 0.0
          %406 = vmatpush1.msra.mxu0 0.0
          %407 = vmatprep.subr.mxu0 0.0
          %408 = vmatpush1.msra.mxu0 0.0
          %409 = vmatprep.subr.mxu0 0.0
          %410 = vmatpush1.msra.mxu0 0.0
          %411 = vmatprep.subr.mxu0 0.0
          %412 = vmatpush1.msra.mxu0 0.0
          %413 = vmatprep.subr.mxu0 0.0
          %414 = vmatpush1.msra.mxu0 0.0
          %415 = vmatprep.subr.mxu0 0.0
          %416 = vmatpush1.msra.mxu0 0.0
          %417 = vmatprep.subr.mxu0 0.0
          %418 = vmatpush1.msra.mxu0 0.0
          %419 = vmatprep.subr.mxu0 0.0
          %420 = vmatpush1.msra.mxu0 0.0
          %421 = vmatprep.subr.mxu0 0.0
          %422 = vmatpush1.msra.mxu0 0.0
          %423 = vmatprep.subr.mxu0 0.0
          %424 = vmatpush1.msra.mxu0 0.0
          %425 = vmatprep.subr.mxu0 0.0
          %426 = vmatpush1.msra.mxu0 0.0
          %427 = vmatprep.subr.mxu0 0.0
          %428 = vmatpush1.msra.mxu0 0.0
          %429 = vmatprep.subr.mxu0 0.0
          %430 = vmatpush1.msra.mxu0 0.0
          %431 = vmatprep.subr.mxu0 0.0
          %432 = vmatpush1.msra.mxu0 0.0
          %433 = vmatprep.subr.mxu0 0.0
          %434 = vmatpush1.msra.mxu0 0.0
          %435 = vmatprep.subr.mxu0 0.0
          %436 = vmatpush1.msra.mxu0 0.0
          %437 = vmatprep.subr.mxu0 0.0
          %438 = vmatpush1.msra.mxu0 0.0
          %439 = vmatprep.subr.mxu0 0.0
          %440 = vmatpush1.msra.mxu0 0.0
          %441 = vmatprep.subr.mxu0 0.0
          %442 = vmatpush1.msra.mxu0 0.0
          %443 = vmatprep.subr.mxu0 0.0
          %444 = vmatpush1.msra.mxu0 0.0
          %445 = vmatprep.subr.mxu0 0.0
          %446 = vmatpush1.msra.mxu0 0.0
          %447 = vmatprep.subr.mxu0 0.0
          %448 = vmatpush1.msra.mxu0 0.0
          %449 = vmatprep.subr.mxu0 0.0
          %450 = vmatpush1.msra.mxu0 0.0
          %451 = vmatprep.subr.mxu0 0.0
          %452 = vmatpush1.msra.mxu0 0.0
          %453 = vmatprep.subr.mxu0 0.0
          %454 = vmatpush1.msra.mxu0 0.0
          %455 = vmatprep.subr.mxu0 0.0
          %456 = vmatpush1.msra.mxu0 0.0
          %457 = vmatprep.subr.mxu0 0.0
          %458 = vmatpush1.msra.mxu0 0.0
          %459 = vmatprep.mubr.f32.mxu0 0.0
          %v460 = vand.u32 %v389, 4294901760
          %v461 = vsub.f32 %v389, %v460
          %v462 = vand.u32 %v461, 4294901760
          %v463 = vsub.f32 %v461, %v462
          %v464 = vand.u32 %v463, 4294901760
          %465 = vmatmul.mubr.f32.gmra.mrb[0].mxu0 %v464
          %v466 = vpop.f32.mrb[0].mxu0
          %v467 = vadd.f32 %v385, %v466
          %v468 = vpop.f32.mrb[0].mxu0
          %469 = vdwg.mxu0
          %470 = vmatprep.subr.mxu0 0.0
          %v471 = vand.u32 %v376, 4294901760
          %v472 = vsub.f32 %v376, %v471
          %v473 = vand.u32 %v472, 4294901760
          %v474 = vsub.f32 %v472, %v473
          %v475 = vand.u32 %v474, 4294901760
          %476 = vmatpush1.msra.mxu0 %v475
          %477 = vmatprep.subr.mxu0 0.0
          %v478 = vand.u32 %v377, 4294901760
          %v479 = vsub.f32 %v377, %v478
          %v480 = vand.u32 %v479, 4294901760
          %v481 = vsub.f32 %v479, %v480
          %v482 = vand.u32 %v481, 4294901760
          %483 = vmatpush1.msra.mxu0 %v482
          %484 = vmatprep.subr.mxu0 0.0
          %v485 = vand.u32 %v378, 4294901760
          %v486 = vsub.f32 %v378, %v485
          %v487 = vand.u32 %v486, 4294901760
          %v488 = vsub.f32 %v486, %v487
          %v489 = vand.u32 %v488, 4294901760
          %490 = vmatpush1.msra.mxu0 %v489
          %491 = vmatprep.subr.mxu0 0.0
          %v492 = vand.u32 %v379, 4294901760
          %v493 = vsub.f32 %v379, %v492
          %v494 = vand.u32 %v493, 4294901760
          %v495 = vsub.f32 %v493, %v494
          %v496 = vand.u32 %v495, 4294901760
          %497 = vmatpush1.msra.mxu0 %v496
          %498 = vmatprep.subr.mxu0 0.0
          %499 = vmatpush1.msra.mxu0 0.0
          %500 = vmatprep.subr.mxu0 0.0
          %501 = vmatpush1.msra.mxu0 0.0
          %502 = vmatprep.subr.mxu0 0.0
          %503 = vmatpush1.msra.mxu0 0.0
          %504 = vmatprep.subr.mxu0 0.0
          %505 = vmatpush1.msra.mxu0 0.0
          %506 = vmatprep.subr.mxu0 0.0
          %507 = vmatpush1.msra.mxu0 0.0
          %508 = vmatprep.subr.mxu0 0.0
          %509 = vmatpush1.msra.mxu0 0.0
          %510 = vmatprep.subr.mxu0 0.0
          %511 = vmatpush1.msra.mxu0 0.0
          %512 = vmatprep.subr.mxu0 0.0
          %513 = vmatpush1.msra.mxu0 0.0
          %514 = vmatprep.subr.mxu0 0.0
          %515 = vmatpush1.msra.mxu0 0.0
          %516 = vmatprep.subr.mxu0 0.0
          %517 = vmatpush1.msra.mxu0 0.0
          %518 = vmatprep.subr.mxu0 0.0
          %519 = vmatpush1.msra.mxu0 0.0
          %520 = vmatprep.subr.mxu0 0.0
          %521 = vmatpush1.msra.mxu0 0.0
          %522 = vmatprep.subr.mxu0 0.0
          %523 = vmatpush1.msra.mxu0 0.0
          %524 = vmatprep.subr.mxu0 0.0
          %525 = vmatpush1.msra.mxu0 0.0
          %526 = vmatprep.subr.mxu0 0.0
          %527 = vmatpush1.msra.mxu0 0.0
          %528 = vmatprep.subr.mxu0 0.0
          %529 = vmatpush1.msra.mxu0 0.0
          %530 = vmatprep.subr.mxu0 0.0
          %531 = vmatpush1.msra.mxu0 0.0
          %532 = vmatprep.subr.mxu0 0.0
          %533 = vmatpush1.msra.mxu0 0.0
          %534 = vmatprep.subr.mxu0 0.0
          %535 = vmatpush1.msra.mxu0 0.0
          %536 = vmatprep.subr.mxu0 0.0
          %537 = vmatpush1.msra.mxu0 0.0
          %538 = vmatprep.subr.mxu0 0.0
          %539 = vmatpush1.msra.mxu0 0.0
          %540 = vmatprep.subr.mxu0 0.0
          %541 = vmatpush1.msra.mxu0 0.0
          %542 = vmatprep.subr.mxu0 0.0
          %543 = vmatpush1.msra.mxu0 0.0
          %544 = vmatprep.subr.mxu0 0.0
          %545 = vmatpush1.msra.mxu0 0.0
          %546 = vmatprep.subr.mxu0 0.0
          %547 = vmatpush1.msra.mxu0 0.0
          %548 = vmatprep.subr.mxu0 0.0
          %549 = vmatpush1.msra.mxu0 0.0
          %550 = vmatprep.subr.mxu0 0.0
          %551 = vmatpush1.msra.mxu0 0.0
          %552 = vmatprep.subr.mxu0 0.0
          %553 = vmatpush1.msra.mxu0 0.0
          %554 = vmatprep.mubr.f32.mxu0 0.0
          %v555 = vand.u32 %v389, 4294901760
          %556 = vmatmul.mubr.f32.gmra.mrb[0].mxu0 %v555
          %v557 = vpop.f32.mrb[0].mxu0
          %v558 = vadd.f32 %v467, %v557
          %v559 = vpop.f32.mrb[0].mxu0
          %560 = vdwg.mxu0
          %561 = vmatprep.subr.mxu0 0.0
          %v562 = vand.u32 %v376, 4294901760
          %v563 = vsub.f32 %v376, %v562
          %564 = vmatpush1.msra.mxu0 %v563
          %565 = vmatprep.subr.mxu0 0.0
          %v566 = vand.u32 %v377, 4294901760
          %v567 = vsub.f32 %v377, %v566
          %568 = vmatpush1.msra.mxu0 %v567
          %569 = vmatprep.subr.mxu0 0.0
          %v570 = vand.u32 %v378, 4294901760
          %v571 = vsub.f32 %v378, %v570
          %572 = vmatpush1.msra.mxu0 %v571
          %573 = vmatprep.subr.mxu0 0.0
          %v574 = vand.u32 %v379, 4294901760
          %v575 = vsub.f32 %v379, %v574
          %576 = vmatpush1.msra.mxu0 %v575
          %577 = vmatprep.subr.mxu0 0.0
          %578 = vmatpush1.msra.mxu0 0.0
          %579 = vmatprep.subr.mxu0 0.0
          %580 = vmatpush1.msra.mxu0 0.0
          %581 = vmatprep.subr.mxu0 0.0
          %582 = vmatpush1.msra.mxu0 0.0
          %583 = vmatprep.subr.mxu0 0.0
          %584 = vmatpush1.msra.mxu0 0.0
          %585 = vmatprep.subr.mxu0 0.0
          %586 = vmatpush1.msra.mxu0 0.0
          %587 = vmatprep.subr.mxu0 0.0
          %588 = vmatpush1.msra.mxu0 0.0
          %589 = vmatprep.subr.mxu0 0.0
          %590 = vmatpush1.msra.mxu0 0.0
          %591 = vmatprep.subr.mxu0 0.0
          %592 = vmatpush1.msra.mxu0 0.0
          %593 = vmatprep.subr.mxu0 0.0
          %594 = vmatpush1.msra.mxu0 0.0
          %595 = vmatprep.subr.mxu0 0.0
          %596 = vmatpush1.msra.mxu0 0.0
          %597 = vmatprep.subr.mxu0 0.0
          %598 = vmatpush1.msra.mxu0 0.0
          %599 = vmatprep.subr.mxu0 0.0
          %600 = vmatpush1.msra.mxu0 0.0
          %601 = vmatprep.subr.mxu0 0.0
          %602 = vmatpush1.msra.mxu0 0.0
          %603 = vmatprep.subr.mxu0 0.0
          %604 = vmatpush1.msra.mxu0 0.0
          %605 = vmatprep.subr.mxu0 0.0
          %606 = vmatpush1.msra.mxu0 0.0
          %607 = vmatprep.subr.mxu0 0.0
          %608 = vmatpush1.msra.mxu0 0.0
          %609 = vmatprep.subr.mxu0 0.0
          %610 = vmatpush1.msra.mxu0 0.0
          %611 = vmatprep.subr.mxu0 0.0
          %612 = vmatpush1.msra.mxu0 0.0
          %613 = vmatprep.subr.mxu0 0.0
          %614 = vmatpush1.msra.mxu0 0.0
          %615 = vmatprep.subr.mxu0 0.0
          %616 = vmatpush1.msra.mxu0 0.0
          %617 = vmatprep.subr.mxu0 0.0
          %618 = vmatpush1.msra.mxu0 0.0
          %619 = vmatprep.subr.mxu0 0.0
          %620 = vmatpush1.msra.mxu0 0.0
          %621 = vmatprep.subr.mxu0 0.0
          %622 = vmatpush1.msra.mxu0 0.0
          %623 = vmatprep.subr.mxu0 0.0
          %624 = vmatpush1.msra.mxu0 0.0
          %625 = vmatprep.subr.mxu0 0.0
          %626 = vmatpush1.msra.mxu0 0.0
          %627 = vmatprep.subr.mxu0 0.0
          %628 = vmatpush1.msra.mxu0 0.0
          %629 = vmatprep.subr.mxu0 0.0
          %630 = vmatpush1.msra.mxu0 0.0
          %631 = vmatprep.subr.mxu0 0.0
          %632 = vmatpush1.msra.mxu0 0.0
          %633 = vmatprep.mubr.f32.mxu0 0.0
          %v634 = vand.u32 %v389, 4294901760
          %v635 = vsub.f32 %v389, %v634
          %636 = vmatmul.mubr.f32.gmra.mrb[0].mxu0 %v635
          %v637 = vpop.f32.mrb[0].mxu0
          %v638 = vadd.f32 %v558, %v637
          %v639 = vpop.f32.mrb[0].mxu0
          %640 = vdwg.mxu0
          %641 = vmatprep.subr.mxu0 0.0
          %v642 = vand.u32 %v376, 4294901760
          %643 = vmatpush1.msra.mxu0 %v642
          %644 = vmatprep.subr.mxu0 0.0
          %v645 = vand.u32 %v377, 4294901760
          %646 = vmatpush1.msra.mxu0 %v645
          %647 = vmatprep.subr.mxu0 0.0
          %v648 = vand.u32 %v378, 4294901760
          %649 = vmatpush1.msra.mxu0 %v648
          %650 = vmatprep.subr.mxu0 0.0
          %v651 = vand.u32 %v379, 4294901760
          %652 = vmatpush1.msra.mxu0 %v651
          %653 = vmatprep.subr.mxu0 0.0
          %654 = vmatpush1.msra.mxu0 0.0
          %655 = vmatprep.subr.mxu0 0.0
          %656 = vmatpush1.msra.mxu0 0.0
          %657 = vmatprep.subr.mxu0 0.0
          %658 = vmatpush1.msra.mxu0 0.0
          %659 = vmatprep.subr.mxu0 0.0
          %660 = vmatpush1.msra.mxu0 0.0
          %661 = vmatprep.subr.mxu0 0.0
          %662 = vmatpush1.msra.mxu0 0.0
          %663 = vmatprep.subr.mxu0 0.0
          %664 = vmatpush1.msra.mxu0 0.0
          %665 = vmatprep.subr.mxu0 0.0
          %666 = vmatpush1.msra.mxu0 0.0
          %667 = vmatprep.subr.mxu0 0.0
          %668 = vmatpush1.msra.mxu0 0.0
          %669 = vmatprep.subr.mxu0 0.0
          %670 = vmatpush1.msra.mxu0 0.0
          %671 = vmatprep.subr.mxu0 0.0
          %672 = vmatpush1.msra.mxu0 0.0
          %673 = vmatprep.subr.mxu0 0.0
          %674 = vmatpush1.msra.mxu0 0.0
          %675 = vmatprep.subr.mxu0 0.0
          %676 = vmatpush1.msra.mxu0 0.0
          %677 = vmatprep.subr.mxu0 0.0
          %678 = vmatpush1.msra.mxu0 0.0
          %679 = vmatprep.subr.mxu0 0.0
          %680 = vmatpush1.msra.mxu0 0.0
          %681 = vmatprep.subr.mxu0 0.0
          %682 = vmatpush1.msra.mxu0 0.0
          %683 = vmatprep.subr.mxu0 0.0
          %684 = vmatpush1.msra.mxu0 0.0
          %685 = vmatprep.subr.mxu0 0.0
          %686 = vmatpush1.msra.mxu0 0.0
          %687 = vmatprep.subr.mxu0 0.0
          %688 = vmatpush1.msra.mxu0 0.0
          %689 = vmatprep.subr.mxu0 0.0
          %690 = vmatpush1.msra.mxu0 0.0
          %691 = vmatprep.subr.mxu0 0.0
          %692 = vmatpush1.msra.mxu0 0.0
          %693 = vmatprep.subr.mxu0 0.0
          %694 = vmatpush1.msra.mxu0 0.0
          %695 = vmatprep.subr.mxu0 0.0
          %696 = vmatpush1.msra.mxu0 0.0
          %697 = vmatprep.subr.mxu0 0.0
          %698 = vmatpush1.msra.mxu0 0.0
          %699 = vmatprep.subr.mxu0 0.0
          %700 = vmatpush1.msra.mxu0 0.0
          %701 = vmatprep.subr.mxu0 0.0
          %702 = vmatpush1.msra.mxu0 0.0
          %703 = vmatprep.subr.mxu0 0.0
          %704 = vmatpush1.msra.mxu0 0.0
          %705 = vmatprep.subr.mxu0 0.0
          %706 = vmatpush1.msra.mxu0 0.0
          %707 = vmatprep.subr.mxu0 0.0
          %708 = vmatpush1.msra.mxu0 0.0
          %709 = vmatprep.mubr.f32.mxu0 0.0
          %v710 = vand.u32 %v389, 4294901760
          %v711 = vsub.f32 %v389, %v710
          %v712 = vand.u32 %v711, 4294901760
          %713 = vmatmul.mubr.f32.gmra.mrb[0].mxu0 %v712
          %v714 = vpop.f32.mrb[0].mxu0
          %v715 = vadd.f32 %v638, %v714
          %v716 = vpop.f32.mrb[0].mxu0
          %717 = vdwg.mxu0
          %718 = vmatprep.subr.mxu0 0.0
          %v719 = vand.u32 %v376, 4294901760
          %v720 = vsub.f32 %v376, %v719
          %v721 = vand.u32 %v720, 4294901760
          %722 = vmatpush1.msra.mxu0 %v721
          %723 = vmatprep.subr.mxu0 0.0
          %v724 = vand.u32 %v377, 4294901760
          %v725 = vsub.f32 %v377, %v724
          %v726 = vand.u32 %v725, 4294901760
          %727 = vmatpush1.msra.mxu0 %v726
          %728 = vmatprep.subr.mxu0 0.0
          %v729 = vand.u32 %v378, 4294901760
          %v730 = vsub.f32 %v378, %v729
          %v731 = vand.u32 %v730, 4294901760
          %732 = vmatpush1.msra.mxu0 %v731
          %733 = vmatprep.subr.mxu0 0.0
          %v734 = vand.u32 %v379, 4294901760
          %v735 = vsub.f32 %v379, %v734
          %v736 = vand.u32 %v735, 4294901760
          %737 = vmatpush1.msra.mxu0 %v736
          %738 = vmatprep.subr.mxu0 0.0
          %739 = vmatpush1.msra.mxu0 0.0
          %740 = vmatprep.subr.mxu0 0.0
          %741 = vmatpush1.msra.mxu0 0.0
          %742 = vmatprep.subr.mxu0 0.0
          %743 = vmatpush1.msra.mxu0 0.0
          %744 = vmatprep.subr.mxu0 0.0
          %745 = vmatpush1.msra.mxu0 0.0
          %746 = vmatprep.subr.mxu0 0.0
          %747 = vmatpush1.msra.mxu0 0.0
          %748 = vmatprep.subr.mxu0 0.0
          %749 = vmatpush1.msra.mxu0 0.0
          %750 = vmatprep.subr.mxu0 0.0
          %751 = vmatpush1.msra.mxu0 0.0
          %752 = vmatprep.subr.mxu0 0.0
          %753 = vmatpush1.msra.mxu0 0.0
          %754 = vmatprep.subr.mxu0 0.0
          %755 = vmatpush1.msra.mxu0 0.0
          %756 = vmatprep.subr.mxu0 0.0
          %757 = vmatpush1.msra.mxu0 0.0
          %758 = vmatprep.subr.mxu0 0.0
          %759 = vmatpush1.msra.mxu0 0.0
          %760 = vmatprep.subr.mxu0 0.0
          %761 = vmatpush1.msra.mxu0 0.0
          %762 = vmatprep.subr.mxu0 0.0
          %763 = vmatpush1.msra.mxu0 0.0
          %764 = vmatprep.subr.mxu0 0.0
          %765 = vmatpush1.msra.mxu0 0.0
          %766 = vmatprep.subr.mxu0 0.0
          %767 = vmatpush1.msra.mxu0 0.0
          %768 = vmatprep.subr.mxu0 0.0
          %769 = vmatpush1.msra.mxu0 0.0
          %770 = vmatprep.subr.mxu0 0.0
          %771 = vmatpush1.msra.mxu0 0.0
          %772 = vmatprep.subr.mxu0 0.0
          %773 = vmatpush1.msra.mxu0 0.0
          %774 = vmatprep.subr.mxu0 0.0
          %775 = vmatpush1.msra.mxu0 0.0
          %776 = vmatprep.subr.mxu0 0.0
          %777 = vmatpush1.msra.mxu0 0.0
          %778 = vmatprep.subr.mxu0 0.0
          %779 = vmatpush1.msra.mxu0 0.0
          %780 = vmatprep.subr.mxu0 0.0
          %781 = vmatpush1.msra.mxu0 0.0
          %782 = vmatprep.subr.mxu0 0.0
          %783 = vmatpush1.msra.mxu0 0.0
          %784 = vmatprep.subr.mxu0 0.0
          %785 = vmatpush1.msra.mxu0 0.0
          %786 = vmatprep.subr.mxu0 0.0
          %787 = vmatpush1.msra.mxu0 0.0
          %788 = vmatprep.subr.mxu0 0.0
          %789 = vmatpush1.msra.mxu0 0.0
          %790 = vmatprep.subr.mxu0 0.0
          %791 = vmatpush1.msra.mxu0 0.0
          %792 = vmatprep.subr.mxu0 0.0
          %793 = vmatpush1.msra.mxu0 0.0
          %794 = vmatprep.mubr.f32.mxu0 0.0
          %v795 = vand.u32 %v389, 4294901760
          %796 = vmatmul.mubr.f32.gmra.mrb[0].mxu0 %v795
          %v797 = vpop.f32.mrb[0].mxu0
          %v798 = vadd.f32 %v715, %v797
          %v799 = vpop.f32.mrb[0].mxu0
          %800 = vdwg.mxu0
          %801 = vmatprep.subr.mxu0 0.0
          %v802 = vand.u32 %v376, 4294901760
          %803 = vmatpush1.msra.mxu0 %v802
          %804 = vmatprep.subr.mxu0 0.0
          %v805 = vand.u32 %v377, 4294901760
          %806 = vmatpush1.msra.mxu0 %v805
          %807 = vmatprep.subr.mxu0 0.0
          %v808 = vand.u32 %v378, 4294901760
          %809 = vmatpush1.msra.mxu0 %v808
          %810 = vmatprep.subr.mxu0 0.0
          %v811 = vand.u32 %v379, 4294901760
          %812 = vmatpush1.msra.mxu0 %v811
          %813 = vmatprep.subr.mxu0 0.0
          %814 = vmatpush1.msra.mxu0 0.0
          %815 = vmatprep.subr.mxu0 0.0
          %816 = vmatpush1.msra.mxu0 0.0
          %817 = vmatprep.subr.mxu0 0.0
          %818 = vmatpush1.msra.mxu0 0.0
          %819 = vmatprep.subr.mxu0 0.0
          %820 = vmatpush1.msra.mxu0 0.0
          %821 = vmatprep.subr.mxu0 0.0
          %822 = vmatpush1.msra.mxu0 0.0
          %823 = vmatprep.subr.mxu0 0.0
          %824 = vmatpush1.msra.mxu0 0.0
          %825 = vmatprep.subr.mxu0 0.0
          %826 = vmatpush1.msra.mxu0 0.0
          %827 = vmatprep.subr.mxu0 0.0
          %828 = vmatpush1.msra.mxu0 0.0
          %829 = vmatprep.subr.mxu0 0.0
          %830 = vmatpush1.msra.mxu0 0.0
          %831 = vmatprep.subr.mxu0 0.0
          %832 = vmatpush1.msra.mxu0 0.0
          %833 = vmatprep.subr.mxu0 0.0
          %834 = vmatpush1.msra.mxu0 0.0
          %835 = vmatprep.subr.mxu0 0.0
          %836 = vmatpush1.msra.mxu0 0.0
          %837 = vmatprep.subr.mxu0 0.0
          %838 = vmatpush1.msra.mxu0 0.0
          %839 = vmatprep.subr.mxu0 0.0
          %840 = vmatpush1.msra.mxu0 0.0
          %841 = vmatprep.subr.mxu0 0.0
          %842 = vmatpush1.msra.mxu0 0.0
          %843 = vmatprep.subr.mxu0 0.0
          %844 = vmatpush1.msra.mxu0 0.0
          %845 = vmatprep.subr.mxu0 0.0
          %846 = vmatpush1.msra.mxu0 0.0
          %847 = vmatprep.subr.mxu0 0.0
          %848 = vmatpush1.msra.mxu0 0.0
          %849 = vmatprep.subr.mxu0 0.0
          %850 = vmatpush1.msra.mxu0 0.0
          %851 = vmatprep.subr.mxu0 0.0
          %852 = vmatpush1.msra.mxu0 0.0
          %853 = vmatprep.subr.mxu0 0.0
          %854 = vmatpush1.msra.mxu0 0.0
          %855 = vmatprep.subr.mxu0 0.0
          %856 = vmatpush1.msra.mxu0 0.0
          %857 = vmatprep.subr.mxu0 0.0
          %858 = vmatpush1.msra.mxu0 0.0
          %859 = vmatprep.subr.mxu0 0.0
          %860 = vmatpush1.msra.mxu0 0.0
          %861 = vmatprep.subr.mxu0 0.0
          %862 = vmatpush1.msra.mxu0 0.0
          %863 = vmatprep.subr.mxu0 0.0
          %864 = vmatpush1.msra.mxu0 0.0
          %865 = vmatprep.subr.mxu0 0.0
          %866 = vmatpush1.msra.mxu0 0.0
          %867 = vmatprep.subr.mxu0 0.0
          %868 = vmatpush1.msra.mxu0 0.0
          %869 = vmatprep.mubr.f32.mxu0 0.0
          %v870 = vand.u32 %v389, 4294901760
          %871 = vmatmul.mubr.f32.gmra.mrb[0].mxu0 %v870
          %v872 = vpop.f32.mrb[0].mxu0
          %v873 = vadd.f32 %v798, %v872
          %v874 = vpop.f32.mrb[0].mxu0
          %875 = vdwg.mxu0
          %vm876 = vcmask 130048
          %877 = vst.msk [vmem:[#allocation2] sm:$0xff] %vm876, %v873
        $region72: #{slr_adapter_forward.1} parent=43 // pred_fallthru
          _
        %v878 = vld [vmem:[%s322] sm:$0xff]
        %v879 = vld [vmem:[#allocation6] sm:$0xff]
        %v880 = vld [vmem:[#allocation6 + $0x8] sm:$0xff]
        %v881 = vld [vmem:[#allocation6 + $0x10] sm:$0xff]
        %v882 = vld [vmem:[#allocation6 + $0x18] sm:$0xff]
        %v883 = vld [vmem:[#allocation2] sm:$0xff]
        %v884 = vld [vmem:[#allocation9] sm:$0xff]
        %v885 = vld [vmem:[#allocation9 + $0x8] sm:$0xff]
        %vm886 = vcmask 130048
        %v888 = vsel %vm886, %v883, 0
        %890 = vmatprep.subr.mxu0 0.0
        %v891 = vand.u32 %v884, 4294901760
        %892 = vmatpush1.msra.mxu0 %v891
        %893 = vmatprep.subr.mxu0 0.0
        %v894 = vand.u32 %v885, 4294901760
        %895 = vmatpush1.msra.mxu0 %v894
        %896 = vmatprep.subr.mxu0 0.0
        %897 = vmatpush1.msra.mxu0 0.0
        %898 = vmatprep.subr.mxu0 0.0
        %899 = vmatpush1.msra.mxu0 0.0
        %900 = vmatprep.subr.mxu0 0.0
        %901 = vmatpush1.msra.mxu0 0.0
        %902 = vmatprep.subr.mxu0 0.0
        %903 = vmatpush1.msra.mxu0 0.0
        %904 = vmatprep.subr.mxu0 0.0
        %905 = vmatpush1.msra.mxu0 0.0
        %906 = vmatprep.subr.mxu0 0.0
        %907 = vmatpush1.msra.mxu0 0.0
        %908 = vmatprep.subr.mxu0 0.0
        %909 = vmatpush1.msra.mxu0 0.0
        %910 = vmatprep.subr.mxu0 0.0
        %911 = vmatpush1.msra.mxu0 0.0
        %912 = vmatprep.subr.mxu0 0.0
        %913 = vmatpush1.msra.mxu0 0.0
        %914 = vmatprep.subr.mxu0 0.0
        %915 = vmatpush1.msra.mxu0 0.0
        %916 = vmatprep.subr.mxu0 0.0
        %917 = vmatpush1.msra.mxu0 0.0
        %918 = vmatprep.subr.mxu0 0.0
        %919 = vmatpush1.msra.mxu0 0.0
        %920 = vmatprep.subr.mxu0 0.0
        %921 = vmatpush1.msra.mxu0 0.0
        %922 = vmatprep.subr.mxu0 0.0
        %923 = vmatpush1.msra.mxu0 0.0
        %924 = vmatprep.subr.mxu0 0.0
        %925 = vmatpush1.msra.mxu0 0.0
        %926 = vmatprep.subr.mxu0 0.0
        %927 = vmatpush1.msra.mxu0 0.0
        %928 = vmatprep.subr.mxu0 0.0
        %929 = vmatpush1.msra.mxu0 0.0
        %930 = vmatprep.subr.mxu0 0.0
        %931 = vmatpush1.msra.mxu0 0.0
        %932 = vmatprep.subr.mxu0 0.0
        %933 = vmatpush1.msra.mxu0 0.0
        %934 = vmatprep.subr.mxu0 0.0
        %935 = vmatpush1.msra.mxu0 0.0
        %936 = vmatprep.subr.mxu0 0.0
        %937 = vmatpush1.msra.mxu0 0.0
        %938 = vmatprep.subr.mxu0 0.0
        %939 = vmatpush1.msra.mxu0 0.0
        %940 = vmatprep.subr.mxu0 0.0
        %941 = vmatpush1.msra.mxu0 0.0
        %942 = vmatprep.subr.mxu0 0.0
        %943 = vmatpush1.msra.mxu0 0.0
        %944 = vmatprep.subr.mxu0 0.0
        %945 = vmatpush1.msra.mxu0 0.0
        %946 = vmatprep.subr.mxu0 0.0
        %947 = vmatpush1.msra.mxu0 0.0
        %948 = vmatprep.subr.mxu0 0.0
        %949 = vmatpush1.msra.mxu0 0.0
        %950 = vmatprep.subr.mxu0 0.0
        %951 = vmatpush1.msra.mxu0 0.0
        %952 = vmatprep.subr.mxu0 0.0
        %953 = vmatpush1.msra.mxu0 0.0
        %954 = vmatprep.subr.mxu0 0.0
        %955 = vmatpush1.msra.mxu0 0.0
        %956 = vmatprep.mubr.f32.mxu0 0.0
        %v957 = vand.u32 %v888, 4294901760
        %v958 = vsub.f32 %v888, %v957
        %v959 = vand.u32 %v958, 4294901760
        %v960 = vsub.f32 %v958, %v959
        %v961 = vand.u32 %v960, 4294901760
        %962 = vmatmul.mubr.f32.gmra.mrb[0].mxu0 %v961
        %v963 = vpop.f32.mrb[0].mxu0
        %v964 = vadd.f32 0.0, %v963
        %v965 = vpop.f32.mrb[0].mxu0
        %966 = vdwg.mxu0
        %967 = vmatprep.subr.mxu0 0.0
        %v968 = vand.u32 %v884, 4294901760
        %v969 = vsub.f32 %v884, %v968
        %v970 = vand.u32 %v969, 4294901760
        %v971 = vsub.f32 %v969, %v970
        %v972 = vand.u32 %v971, 4294901760
        %973 = vmatpush1.msra.mxu0 %v972
        %974 = vmatprep.subr.mxu0 0.0
        %v975 = vand.u32 %v885, 4294901760
        %v976 = vsub.f32 %v885, %v975
        %v977 = vand.u32 %v976, 4294901760
        %v978 = vsub.f32 %v976, %v977
        %v979 = vand.u32 %v978, 4294901760
        %980 = vmatpush1.msra.mxu0 %v979
        %981 = vmatprep.subr.mxu0 0.0
        %982 = vmatpush1.msra.mxu0 0.0
        %983 = vmatprep.subr.mxu0 0.0
        %984 = vmatpush1.msra.mxu0 0.0
        %985 = vmatprep.subr.mxu0 0.0
        %986 = vmatpush1.msra.mxu0 0.0
        %987 = vmatprep.subr.mxu0 0.0
        %988 = vmatpush1.msra.mxu0 0.0
        %989 = vmatprep.subr.mxu0 0.0
        %990 = vmatpush1.msra.mxu0 0.0
        %991 = vmatprep.subr.mxu0 0.0
        %992 = vmatpush1.msra.mxu0 0.0
        %993 = vmatprep.subr.mxu0 0.0
        %994 = vmatpush1.msra.mxu0 0.0
        %995 = vmatprep.subr.mxu0 0.0
        %996 = vmatpush1.msra.mxu0 0.0
        %997 = vmatprep.subr.mxu0 0.0
        %998 = vmatpush1.msra.mxu0 0.0
        %999 = vmatprep.subr.mxu0 0.0
        %1000 = vmatpush1.msra.mxu0 0.0
        %1001 = vmatprep.subr.mxu0 0.0
        %1002 = vmatpush1.msra.mxu0 0.0
        %1003 = vmatprep.subr.mxu0 0.0
        %1004 = vmatpush1.msra.mxu0 0.0
        %1005 = vmatprep.subr.mxu0 0.0
        %1006 = vmatpush1.msra.mxu0 0.0
        %1007 = vmatprep.subr.mxu0 0.0
        %1008 = vmatpush1.msra.mxu0 0.0
        %1009 = vmatprep.subr.mxu0 0.0
        %1010 = vmatpush1.msra.mxu0 0.0
        %1011 = vmatprep.subr.mxu0 0.0
        %1012 = vmatpush1.msra.mxu0 0.0
        %1013 = vmatprep.subr.mxu0 0.0
        %1014 = vmatpush1.msra.mxu0 0.0
        %1015 = vmatprep.subr.mxu0 0.0
        %1016 = vmatpush1.msra.mxu0 0.0
        %1017 = vmatprep.subr.mxu0 0.0
        %1018 = vmatpush1.msra.mxu0 0.0
        %1019 = vmatprep.subr.mxu0 0.0
        %1020 = vmatpush1.msra.mxu0 0.0
        %1021 = vmatprep.subr.mxu0 0.0
        %1022 = vmatpush1.msra.mxu0 0.0
        %1023 = vmatprep.subr.mxu0 0.0
        %1024 = vmatpush1.msra.mxu0 0.0
        %1025 = vmatprep.subr.mxu0 0.0
        %1026 = vmatpush1.msra.mxu0 0.0
        %1027 = vmatprep.subr.mxu0 0.0
        %1028 = vmatpush1.msra.mxu0 0.0
        %1029 = vmatprep.subr.mxu0 0.0
        %1030 = vmatpush1.msra.mxu0 0.0
        %1031 = vmatprep.subr.mxu0 0.0
        %1032 = vmatpush1.msra.mxu0 0.0
        %1033 = vmatprep.subr.mxu0 0.0
        %1034 = vmatpush1.msra.mxu0 0.0
        %1035 = vmatprep.subr.mxu0 0.0
        %1036 = vmatpush1.msra.mxu0 0.0
        %1037 = vmatprep.subr.mxu0 0.0
        %1038 = vmatpush1.msra.mxu0 0.0
        %1039 = vmatprep.subr.mxu0 0.0
        %1040 = vmatpush1.msra.mxu0 0.0
        %1041 = vmatprep.mubr.f32.mxu0 0.0
        %v1042 = vand.u32 %v888, 4294901760
        %1043 = vmatmul.mubr.f32.gmra.mrb[0].mxu0 %v1042
        %v1044 = vpop.f32.mrb[0].mxu0
        %v1045 = vadd.f32 %v964, %v1044
        %v1046 = vpop.f32.mrb[0].mxu0
        %1047 = vdwg.mxu0
        %1048 = vmatprep.subr.mxu0 0.0
        %v1049 = vand.u32 %v884, 4294901760
        %v1050 = vsub.f32 %v884, %v1049
        %1051 = vmatpush1.msra.mxu0 %v1050
        %1052 = vmatprep.subr.mxu0 0.0
        %v1053 = vand.u32 %v885, 4294901760
        %v1054 = vsub.f32 %v885, %v1053
        %1055 = vmatpush1.msra.mxu0 %v1054
        %1056 = vmatprep.subr.mxu0 0.0
        %1057 = vmatpush1.msra.mxu0 0.0
        %1058 = vmatprep.subr.mxu0 0.0
        %1059 = vmatpush1.msra.mxu0 0.0
        %1060 = vmatprep.subr.mxu0 0.0
        %1061 = vmatpush1.msra.mxu0 0.0
        %1062 = vmatprep.subr.mxu0 0.0
        %1063 = vmatpush1.msra.mxu0 0.0
        %1064 = vmatprep.subr.mxu0 0.0
        %1065 = vmatpush1.msra.mxu0 0.0
        %1066 = vmatprep.subr.mxu0 0.0
        %1067 = vmatpush1.msra.mxu0 0.0
        %1068 = vmatprep.subr.mxu0 0.0
        %1069 = vmatpush1.msra.mxu0 0.0
        %1070 = vmatprep.subr.mxu0 0.0
        %1071 = vmatpush1.msra.mxu0 0.0
        %1072 = vmatprep.subr.mxu0 0.0
        %1073 = vmatpush1.msra.mxu0 0.0
        %1074 = vmatprep.subr.mxu0 0.0
        %1075 = vmatpush1.msra.mxu0 0.0
        %1076 = vmatprep.subr.mxu0 0.0
        %1077 = vmatpush1.msra.mxu0 0.0
        %1078 = vmatprep.subr.mxu0 0.0
        %1079 = vmatpush1.msra.mxu0 0.0
        %1080 = vmatprep.subr.mxu0 0.0
        %1081 = vmatpush1.msra.mxu0 0.0
        %1082 = vmatprep.subr.mxu0 0.0
        %1083 = vmatpush1.msra.mxu0 0.0
        %1084 = vmatprep.subr.mxu0 0.0
        %1085 = vmatpush1.msra.mxu0 0.0
        %1086 = vmatprep.subr.mxu0 0.0
        %1087 = vmatpush1.msra.mxu0 0.0
        %1088 = vmatprep.subr.mxu0 0.0
        %1089 = vmatpush1.msra.mxu0 0.0
        %1090 = vmatprep.subr.mxu0 0.0
        %1091 = vmatpush1.msra.mxu0 0.0
        %1092 = vmatprep.subr.mxu0 0.0
        %1093 = vmatpush1.msra.mxu0 0.0
        %1094 = vmatprep.subr.mxu0 0.0
        %1095 = vmatpush1.msra.mxu0 0.0
        %1096 = vmatprep.subr.mxu0 0.0
        %1097 = vmatpush1.msra.mxu0 0.0
        %1098 = vmatprep.subr.mxu0 0.0
        %1099 = vmatpush1.msra.mxu0 0.0
        %1100 = vmatprep.subr.mxu0 0.0
        %1101 = vmatpush1.msra.mxu0 0.0
        %1102 = vmatprep.subr.mxu0 0.0
        %1103 = vmatpush1.msra.mxu0 0.0
        %1104 = vmatprep.subr.mxu0 0.0
        %1105 = vmatpush1.msra.mxu0 0.0
        %1106 = vmatprep.subr.mxu0 0.0
        %1107 = vmatpush1.msra.mxu0 0.0
        %1108 = vmatprep.subr.mxu0 0.0
        %1109 = vmatpush1.msra.mxu0 0.0
        %1110 = vmatprep.subr.mxu0 0.0
        %1111 = vmatpush1.msra.mxu0 0.0
        %1112 = vmatprep.subr.mxu0 0.0
        %1113 = vmatpush1.msra.mxu0 0.0
        %1114 = vmatprep.subr.mxu0 0.0
        %1115 = vmatpush1.msra.mxu0 0.0
        %1116 = vmatprep.mubr.f32.mxu0 0.0
        %v1117 = vand.u32 %v888, 4294901760
        %v1118 = vsub.f32 %v888, %v1117
        %1119 = vmatmul.mubr.f32.gmra.mrb[0].mxu0 %v1118
        %v1120 = vpop.f32.mrb[0].mxu0
        %v1121 = vadd.f32 %v1045, %v1120
        %v1122 = vpop.f32.mrb[0].mxu0
        %1123 = vdwg.mxu0
        %1124 = vmatprep.subr.mxu0 0.0
        %v1125 = vand.u32 %v884, 4294901760
        %1126 = vmatpush1.msra.mxu0 %v1125
        %1127 = vmatprep.subr.mxu0 0.0
        %v1128 = vand.u32 %v885, 4294901760
        %1129 = vmatpush1.msra.mxu0 %v1128
        %1130 = vmatprep.subr.mxu0 0.0
        %1131 = vmatpush1.msra.mxu0 0.0
        %1132 = vmatprep.subr.mxu0 0.0
        %1133 = vmatpush1.msra.mxu0 0.0
        %1134 = vmatprep.subr.mxu0 0.0
        %1135 = vmatpush1.msra.mxu0 0.0
        %1136 = vmatprep.subr.mxu0 0.0
        %1137 = vmatpush1.msra.mxu0 0.0
        %1138 = vmatprep.subr.mxu0 0.0
        %1139 = vmatpush1.msra.mxu0 0.0
        %1140 = vmatprep.subr.mxu0 0.0
        %1141 = vmatpush1.msra.mxu0 0.0
        %1142 = vmatprep.subr.mxu0 0.0
        %1143 = vmatpush1.msra.mxu0 0.0
        %1144 = vmatprep.subr.mxu0 0.0
        %1145 = vmatpush1.msra.mxu0 0.0
        %1146 = vmatprep.subr.mxu0 0.0
        %1147 = vmatpush1.msra.mxu0 0.0
        %1148 = vmatprep.subr.mxu0 0.0
        %1149 = vmatpush1.msra.mxu0 0.0
        %1150 = vmatprep.subr.mxu0 0.0
        %1151 = vmatpush1.msra.mxu0 0.0
        %1152 = vmatprep.subr.mxu0 0.0
        %1153 = vmatpush1.msra.mxu0 0.0
        %1154 = vmatprep.subr.mxu0 0.0
        %1155 = vmatpush1.msra.mxu0 0.0
        %1156 = vmatprep.subr.mxu0 0.0
        %1157 = vmatpush1.msra.mxu0 0.0
        %1158 = vmatprep.subr.mxu0 0.0
        %1159 = vmatpush1.msra.mxu0 0.0
        %1160 = vmatprep.subr.mxu0 0.0
        %1161 = vmatpush1.msra.mxu0 0.0
        %1162 = vmatprep.subr.mxu0 0.0
        %1163 = vmatpush1.msra.mxu0 0.0
        %1164 = vmatprep.subr.mxu0 0.0
        %1165 = vmatpush1.msra.mxu0 0.0
        %1166 = vmatprep.subr.mxu0 0.0
        %1167 = vmatpush1.msra.mxu0 0.0
        %1168 = vmatprep.subr.mxu0 0.0
        %1169 = vmatpush1.msra.mxu0 0.0
        %1170 = vmatprep.subr.mxu0 0.0
        %1171 = vmatpush1.msra.mxu0 0.0
        %1172 = vmatprep.subr.mxu0 0.0
        %1173 = vmatpush1.msra.mxu0 0.0
        %1174 = vmatprep.subr.mxu0 0.0
        %1175 = vmatpush1.msra.mxu0 0.0
        %1176 = vmatprep.subr.mxu0 0.0
        %1177 = vmatpush1.msra.mxu0 0.0
        %1178 = vmatprep.subr.mxu0 0.0
        %1179 = vmatpush1.msra.mxu0 0.0
        %1180 = vmatprep.subr.mxu0 0.0
        %1181 = vmatpush1.msra.mxu0 0.0
        %1182 = vmatprep.subr.mxu0 0.0
        %1183 = vmatpush1.msra.mxu0 0.0
        %1184 = vmatprep.subr.mxu0 0.0
        %1185 = vmatpush1.msra.mxu0 0.0
        %1186 = vmatprep.subr.mxu0 0.0
        %1187 = vmatpush1.msra.mxu0 0.0
        %1188 = vmatprep.subr.mxu0 0.0
        %1189 = vmatpush1.msra.mxu0 0.0
        %1190 = vmatprep.mubr.f32.mxu0 0.0
        %v1191 = vand.u32 %v888, 4294901760
        %v1192 = vsub.f32 %v888, %v1191
        %v1193 = vand.u32 %v1192, 4294901760
        %1194 = vmatmul.mubr.f32.gmra.mrb[0].mxu0 %v1193
        %v1195 = vpop.f32.mrb[0].mxu0
        %v1196 = vadd.f32 %v1121, %v1195
        %v1197 = vpop.f32.mrb[0].mxu0
        %1198 = vdwg.mxu0
        %1199 = vmatprep.subr.mxu0 0.0
        %v1200 = vand.u32 %v884, 4294901760
        %v1201 = vsub.f32 %v884, %v1200
        %v1202 = vand.u32 %v1201, 4294901760
        %1203 = vmatpush1.msra.mxu0 %v1202
        %1204 = vmatprep.subr.mxu0 0.0
        %v1205 = vand.u32 %v885, 4294901760
        %v1206 = vsub.f32 %v885, %v1205
        %v1207 = vand.u32 %v1206, 4294901760
        %1208 = vmatpush1.msra.mxu0 %v1207
        %1209 = vmatprep.subr.mxu0 0.0
        %1210 = vmatpush1.msra.mxu0 0.0
        %1211 = vmatprep.subr.mxu0 0.0
        %1212 = vmatpush1.msra.mxu0 0.0
        %1213 = vmatprep.subr.mxu0 0.0
        %1214 = vmatpush1.msra.mxu0 0.0
        %1215 = vmatprep.subr.mxu0 0.0
        %1216 = vmatpush1.msra.mxu0 0.0
        %1217 = vmatprep.subr.mxu0 0.0
        %1218 = vmatpush1.msra.mxu0 0.0
        %1219 = vmatprep.subr.mxu0 0.0
        %1220 = vmatpush1.msra.mxu0 0.0
        %1221 = vmatprep.subr.mxu0 0.0
        %1222 = vmatpush1.msra.mxu0 0.0
        %1223 = vmatprep.subr.mxu0 0.0
        %1224 = vmatpush1.msra.mxu0 0.0
        %1225 = vmatprep.subr.mxu0 0.0
        %1226 = vmatpush1.msra.mxu0 0.0
        %1227 = vmatprep.subr.mxu0 0.0
        %1228 = vmatpush1.msra.mxu0 0.0
        %1229 = vmatprep.subr.mxu0 0.0
        %1230 = vmatpush1.msra.mxu0 0.0
        %1231 = vmatprep.subr.mxu0 0.0
        %1232 = vmatpush1.msra.mxu0 0.0
        %1233 = vmatprep.subr.mxu0 0.0
        %1234 = vmatpush1.msra.mxu0 0.0
        %1235 = vmatprep.subr.mxu0 0.0
        %1236 = vmatpush1.msra.mxu0 0.0
        %1237 = vmatprep.subr.mxu0 0.0
        %1238 = vmatpush1.msra.mxu0 0.0
        %1239 = vmatprep.subr.mxu0 0.0
        %1240 = vmatpush1.msra.mxu0 0.0
        %1241 = vmatprep.subr.mxu0 0.0
        %1242 = vmatpush1.msra.mxu0 0.0
        %1243 = vmatprep.subr.mxu0 0.0
        %1244 = vmatpush1.msra.mxu0 0.0
        %1245 = vmatprep.subr.mxu0 0.0
        %1246 = vmatpush1.msra.mxu0 0.0
        %1247 = vmatprep.subr.mxu0 0.0
        %1248 = vmatpush1.msra.mxu0 0.0
        %1249 = vmatprep.subr.mxu0 0.0
        %1250 = vmatpush1.msra.mxu0 0.0
        %1251 = vmatprep.subr.mxu0 0.0
        %1252 = vmatpush1.msra.mxu0 0.0
        %1253 = vmatprep.subr.mxu0 0.0
        %1254 = vmatpush1.msra.mxu0 0.0
        %1255 = vmatprep.subr.mxu0 0.0
        %1256 = vmatpush1.msra.mxu0 0.0
        %1257 = vmatprep.subr.mxu0 0.0
        %1258 = vmatpush1.msra.mxu0 0.0
        %1259 = vmatprep.subr.mxu0 0.0
        %1260 = vmatpush1.msra.mxu0 0.0
        %1261 = vmatprep.subr.mxu0 0.0
        %1262 = vmatpush1.msra.mxu0 0.0
        %1263 = vmatprep.subr.mxu0 0.0
        %1264 = vmatpush1.msra.mxu0 0.0
        %1265 = vmatprep.subr.mxu0 0.0
        %1266 = vmatpush1.msra.mxu0 0.0
        %1267 = vmatprep.subr.mxu0 0.0
        %1268 = vmatpush1.msra.mxu0 0.0
        %1269 = vmatprep.mubr.f32.mxu0 0.0
        %v1270 = vand.u32 %v888, 4294901760
        %1271 = vmatmul.mubr.f32.gmra.mrb[0].mxu0 %v1270
        %v1272 = vpop.f32.mrb[0].mxu0
        %v1273 = vadd.f32 %v1196, %v1272
        %v1274 = vpop.f32.mrb[0].mxu0
        %1275 = vdwg.mxu0
        %1276 = vmatprep.subr.mxu0 0.0
        %v1277 = vand.u32 %v884, 4294901760
        %1278 = vmatpush1.msra.mxu0 %v1277
        %1279 = vmatprep.subr.mxu0 0.0
        %v1280 = vand.u32 %v885, 4294901760
        %1281 = vmatpush1.msra.mxu0 %v1280
        %1282 = vmatprep.subr.mxu0 0.0
        %1283 = vmatpush1.msra.mxu0 0.0
        %1284 = vmatprep.subr.mxu0 0.0
        %1285 = vmatpush1.msra.mxu0 0.0
        %1286 = vmatprep.subr.mxu0 0.0
        %1287 = vmatpush1.msra.mxu0 0.0
        %1288 = vmatprep.subr.mxu0 0.0
        %1289 = vmatpush1.msra.mxu0 0.0
        %1290 = vmatprep.subr.mxu0 0.0
        %1291 = vmatpush1.msra.mxu0 0.0
        %1292 = vmatprep.subr.mxu0 0.0
        %1293 = vmatpush1.msra.mxu0 0.0
        %1294 = vmatprep.subr.mxu0 0.0
        %1295 = vmatpush1.msra.mxu0 0.0
        %1296 = vmatprep.subr.mxu0 0.0
        %1297 = vmatpush1.msra.mxu0 0.0
        %1298 = vmatprep.subr.mxu0 0.0
        %1299 = vmatpush1.msra.mxu0 0.0
        %1300 = vmatprep.subr.mxu0 0.0
        %1301 = vmatpush1.msra.mxu0 0.0
        %1302 = vmatprep.subr.mxu0 0.0
        %1303 = vmatpush1.msra.mxu0 0.0
        %1304 = vmatprep.subr.mxu0 0.0
        %1305 = vmatpush1.msra.mxu0 0.0
        %1306 = vmatprep.subr.mxu0 0.0
        %1307 = vmatpush1.msra.mxu0 0.0
        %1308 = vmatprep.subr.mxu0 0.0
        %1309 = vmatpush1.msra.mxu0 0.0
        %1310 = vmatprep.subr.mxu0 0.0
        %1311 = vmatpush1.msra.mxu0 0.0
        %1312 = vmatprep.subr.mxu0 0.0
        %1313 = vmatpush1.msra.mxu0 0.0
        %1314 = vmatprep.subr.mxu0 0.0
        %1315 = vmatpush1.msra.mxu0 0.0
        %1316 = vmatprep.subr.mxu0 0.0
        %1317 = vmatpush1.msra.mxu0 0.0
        %1318 = vmatprep.subr.mxu0 0.0
        %1319 = vmatpush1.msra.mxu0 0.0
        %1320 = vmatprep.subr.mxu0 0.0
        %1321 = vmatpush1.msra.mxu0 0.0
        %1322 = vmatprep.subr.mxu0 0.0
        %1323 = vmatpush1.msra.mxu0 0.0
        %1324 = vmatprep.subr.mxu0 0.0
        %1325 = vmatpush1.msra.mxu0 0.0
        %1326 = vmatprep.subr.mxu0 0.0
        %1327 = vmatpush1.msra.mxu0 0.0
        %1328 = vmatprep.subr.mxu0 0.0
        %1329 = vmatpush1.msra.mxu0 0.0
        %1330 = vmatprep.subr.mxu0 0.0
        %1331 = vmatpush1.msra.mxu0 0.0
        %1332 = vmatprep.subr.mxu0 0.0
        %1333 = vmatpush1.msra.mxu0 0.0
        %1334 = vmatprep.subr.mxu0 0.0
        %1335 = vmatpush1.msra.mxu0 0.0
        %1336 = vmatprep.subr.mxu0 0.0
        %1337 = vmatpush1.msra.mxu0 0.0
        %1338 = vmatprep.subr.mxu0 0.0
        %1339 = vmatpush1.msra.mxu0 0.0
        %1340 = vmatprep.subr.mxu0 0.0
        %1341 = vmatpush1.msra.mxu0 0.0
        %1342 = vmatprep.mubr.f32.mxu0 0.0
        %v1343 = vand.u32 %v888, 4294901760
        %1344 = vmatmul.mubr.f32.gmra.mrb[0].mxu0 %v1343
        %v1345 = vpop.f32.mrb[0].mxu0
        %v1346 = vadd.f32 %v1273, %v1345
        %v1347 = vpop.f32.mrb[0].mxu0
        %1348 = vdwg.mxu0
        %v1349 = vld [vmem:[#allocation11] sm:$0x1]
        %v1351 = vlaneseq
        %v1352 = vshrl.u32 %v1351, 7
        %v1353 = vsub.s32 0, %v1352
        %v1354 = vrot.slane %v1349, %v1353
        %vm1356 = vcmask 261120
        %v1358 = vsel %vm1356, %v878, 0
        %1360 = vmatprep.subr.mxu0 0.0
        %v1361 = vand.u32 %v879, 4294901760
        %1362 = vmatpush1.msra.mxu0 %v1361
        %1363 = vmatprep.subr.mxu0 0.0
        %v1364 = vand.u32 %v880, 4294901760
        %1365 = vmatpush1.msra.mxu0 %v1364
        %1366 = vmatprep.subr.mxu0 0.0
        %v1367 = vand.u32 %v881, 4294901760
        %1368 = vmatpush1.msra.mxu0 %v1367
        %1369 = vmatprep.subr.mxu0 0.0
        %v1370 = vand.u32 %v882, 4294901760
        %1371 = vmatpush1.msra.mxu0 %v1370
        %1372 = vmatprep.subr.mxu0 0.0
        %1373 = vmatpush1.msra.mxu0 0.0
        %1374 = vmatprep.subr.mxu0 0.0
        %1375 = vmatpush1.msra.mxu0 0.0
        %1376 = vmatprep.subr.mxu0 0.0
        %1377 = vmatpush1.msra.mxu0 0.0
        %1378 = vmatprep.subr.mxu0 0.0
        %1379 = vmatpush1.msra.mxu0 0.0
        %1380 = vmatprep.subr.mxu0 0.0
        %1381 = vmatpush1.msra.mxu0 0.0
        %1382 = vmatprep.subr.mxu0 0.0
        %1383 = vmatpush1.msra.mxu0 0.0
        %1384 = vmatprep.subr.mxu0 0.0
        %1385 = vmatpush1.msra.mxu0 0.0
        %1386 = vmatprep.subr.mxu0 0.0
        %1387 = vmatpush1.msra.mxu0 0.0
        %1388 = vmatprep.subr.mxu0 0.0
        %1389 = vmatpush1.msra.mxu0 0.0
        %1390 = vmatprep.subr.mxu0 0.0
        %1391 = vmatpush1.msra.mxu0 0.0
        %1392 = vmatprep.subr.mxu0 0.0
        %1393 = vmatpush1.msra.mxu0 0.0
        %1394 = vmatprep.subr.mxu0 0.0
        %1395 = vmatpush1.msra.mxu0 0.0
        %1396 = vmatprep.subr.mxu0 0.0
        %1397 = vmatpush1.msra.mxu0 0.0
        %1398 = vmatprep.subr.mxu0 0.0
        %1399 = vmatpush1.msra.mxu0 0.0
        %1400 = vmatprep.subr.mxu0 0.0
        %1401 = vmatpush1.msra.mxu0 0.0
        %1402 = vmatprep.subr.mxu0 0.0
        %1403 = vmatpush1.msra.mxu0 0.0
        %1404 = vmatprep.subr.mxu0 0.0
        %1405 = vmatpush1.msra.mxu0 0.0
        %1406 = vmatprep.subr.mxu0 0.0
        %1407 = vmatpush1.msra.mxu0 0.0
        %1408 = vmatprep.subr.mxu0 0.0
        %1409 = vmatpush1.msra.mxu0 0.0
        %1410 = vmatprep.subr.mxu0 0.0
        %1411 = vmatpush1.msra.mxu0 0.0
        %1412 = vmatprep.subr.mxu0 0.0
        %1413 = vmatpush1.msra.mxu0 0.0
        %1414 = vmatprep.subr.mxu0 0.0
        %1415 = vmatpush1.msra.mxu0 0.0
        %1416 = vmatprep.subr.mxu0 0.0
        %1417 = vmatpush1.msra.mxu0 0.0
        %1418 = vmatprep.subr.mxu0 0.0
        %1419 = vmatpush1.msra.mxu0 0.0
        %1420 = vmatprep.subr.mxu0 0.0
        %1421 = vmatpush1.msra.mxu0 0.0
        %1422 = vmatprep.subr.mxu0 0.0
        %1423 = vmatpush1.msra.mxu0 0.0
        %1424 = vmatprep.subr.mxu0 0.0
        %1425 = vmatpush1.msra.mxu0 0.0
        %1426 = vmatprep.subr.mxu0 0.0
        %1427 = vmatpush1.msra.mxu0 0.0
        %1428 = vmatprep.mubr.f32.mxu0 0.0
        %v1429 = vand.u32 %v1358, 4294901760
        %v1430 = vsub.f32 %v1358, %v1429
        %v1431 = vand.u32 %v1430, 4294901760
        %v1432 = vsub.f32 %v1430, %v1431
        %v1433 = vand.u32 %v1432, 4294901760
        %1434 = vmatmul.mubr.f32.gmra.mrb[0].mxu0 %v1433
        %v1435 = vpop.f32.mrb[0].mxu0
        %v1436 = vadd.f32 %v1354, %v1435
        %v1437 = vpop.f32.mrb[0].mxu0
        %1438 = vdwg.mxu0
        %1439 = vmatprep.subr.mxu0 0.0
        %v1440 = vand.u32 %v879, 4294901760
        %v1441 = vsub.f32 %v879, %v1440
        %v1442 = vand.u32 %v1441, 4294901760
        %v1443 = vsub.f32 %v1441, %v1442
        %v1444 = vand.u32 %v1443, 4294901760
        %1445 = vmatpush1.msra.mxu0 %v1444
        %1446 = vmatprep.subr.mxu0 0.0
        %v1447 = vand.u32 %v880, 4294901760
        %v1448 = vsub.f32 %v880, %v1447
        %v1449 = vand.u32 %v1448, 4294901760
        %v1450 = vsub.f32 %v1448, %v1449
        %v1451 = vand.u32 %v1450, 4294901760
        %1452 = vmatpush1.msra.mxu0 %v1451
        %1453 = vmatprep.subr.mxu0 0.0
        %v1454 = vand.u32 %v881, 4294901760
        %v1455 = vsub.f32 %v881, %v1454
        %v1456 = vand.u32 %v1455, 4294901760
        %v1457 = vsub.f32 %v1455, %v1456
        %v1458 = vand.u32 %v1457, 4294901760
        %1459 = vmatpush1.msra.mxu0 %v1458
        %1460 = vmatprep.subr.mxu0 0.0
        %v1461 = vand.u32 %v882, 4294901760
        %v1462 = vsub.f32 %v882, %v1461
        %v1463 = vand.u32 %v1462, 4294901760
        %v1464 = vsub.f32 %v1462, %v1463
        %v1465 = vand.u32 %v1464, 4294901760
        %1466 = vmatpush1.msra.mxu0 %v1465
        %1467 = vmatprep.subr.mxu0 0.0
        %1468 = vmatpush1.msra.mxu0 0.0
        %1469 = vmatprep.subr.mxu0 0.0
        %1470 = vmatpush1.msra.mxu0 0.0
        %1471 = vmatprep.subr.mxu0 0.0
        %1472 = vmatpush1.msra.mxu0 0.0
        %1473 = vmatprep.subr.mxu0 0.0
        %1474 = vmatpush1.msra.mxu0 0.0
        %1475 = vmatprep.subr.mxu0 0.0
        %1476 = vmatpush1.msra.mxu0 0.0
        %1477 = vmatprep.subr.mxu0 0.0
        %1478 = vmatpush1.msra.mxu0 0.0
        %1479 = vmatprep.subr.mxu0 0.0
        %1480 = vmatpush1.msra.mxu0 0.0
        %1481 = vmatprep.subr.mxu0 0.0
        %1482 = vmatpush1.msra.mxu0 0.0
        %1483 = vmatprep.subr.mxu0 0.0
        %1484 = vmatpush1.msra.mxu0 0.0
        %1485 = vmatprep.subr.mxu0 0.0
        %1486 = vmatpush1.msra.mxu0 0.0
        %1487 = vmatprep.subr.mxu0 0.0
        %1488 = vmatpush1.msra.mxu0 0.0
        %1489 = vmatprep.subr.mxu0 0.0
        %1490 = vmatpush1.msra.mxu0 0.0
        %1491 = vmatprep.subr.mxu0 0.0
        %1492 = vmatpush1.msra.mxu0 0.0
        %1493 = vmatprep.subr.mxu0 0.0
        %1494 = vmatpush1.msra.mxu0 0.0
        %1495 = vmatprep.subr.mxu0 0.0
        %1496 = vmatpush1.msra.mxu0 0.0
        %1497 = vmatprep.subr.mxu0 0.0
        %1498 = vmatpush1.msra.mxu0 0.0
        %1499 = vmatprep.subr.mxu0 0.0
        %1500 = vmatpush1.msra.mxu0 0.0
        %1501 = vmatprep.subr.mxu0 0.0
        %1502 = vmatpush1.msra.mxu0 0.0
        %1503 = vmatprep.subr.mxu0 0.0
        %1504 = vmatpush1.msra.mxu0 0.0
        %1505 = vmatprep.subr.mxu0 0.0
        %1506 = vmatpush1.msra.mxu0 0.0
        %1507 = vmatprep.subr.mxu0 0.0
        %1508 = vmatpush1.msra.mxu0 0.0
        %1509 = vmatprep.subr.mxu0 0.0
        %1510 = vmatpush1.msra.mxu0 0.0
        %1511 = vmatprep.subr.mxu0 0.0
        %1512 = vmatpush1.msra.mxu0 0.0
        %1513 = vmatprep.subr.mxu0 0.0
        %1514 = vmatpush1.msra.mxu0 0.0
        %1515 = vmatprep.subr.mxu0 0.0
        %1516 = vmatpush1.msra.mxu0 0.0
        %1517 = vmatprep.subr.mxu0 0.0
        %1518 = vmatpush1.msra.mxu0 0.0
        %1519 = vmatprep.subr.mxu0 0.0
        %1520 = vmatpush1.msra.mxu0 0.0
        %1521 = vmatprep.subr.mxu0 0.0
        %1522 = vmatpush1.msra.mxu0 0.0
        %1523 = vmatprep.mubr.f32.mxu0 0.0
        %v1524 = vand.u32 %v1358, 4294901760
        %1525 = vmatmul.mubr.f32.gmra.mrb[0].mxu0 %v1524
        %v1526 = vpop.f32.mrb[0].mxu0
        %v1527 = vadd.f32 %v1436, %v1526
        %v1528 = vpop.f32.mrb[0].mxu0
        %1529 = vdwg.mxu0
        %1530 = vmatprep.subr.mxu0 0.0
        %v1531 = vand.u32 %v879, 4294901760
        %v1532 = vsub.f32 %v879, %v1531
        %1533 = vmatpush1.msra.mxu0 %v1532
        %1534 = vmatprep.subr.mxu0 0.0
        %v1535 = vand.u32 %v880, 4294901760
        %v1536 = vsub.f32 %v880, %v1535
        %1537 = vmatpush1.msra.mxu0 %v1536
        %1538 = vmatprep.subr.mxu0 0.0
        %v1539 = vand.u32 %v881, 4294901760
        %v1540 = vsub.f32 %v881, %v1539
        %1541 = vmatpush1.msra.mxu0 %v1540
        %1542 = vmatprep.subr.mxu0 0.0
        %v1543 = vand.u32 %v882, 4294901760
        %v1544 = vsub.f32 %v882, %v1543
        %1545 = vmatpush1.msra.mxu0 %v1544
        %1546 = vmatprep.subr.mxu0 0.0
        %1547 = vmatpush1.msra.mxu0 0.0
        %1548 = vmatprep.subr.mxu0 0.0
        %1549 = vmatpush1.msra.mxu0 0.0
        %1550 = vmatprep.subr.mxu0 0.0
        %1551 = vmatpush1.msra.mxu0 0.0
        %1552 = vmatprep.subr.mxu0 0.0
        %1553 = vmatpush1.msra.mxu0 0.0
        %1554 = vmatprep.subr.mxu0 0.0
        %1555 = vmatpush1.msra.mxu0 0.0
        %1556 = vmatprep.subr.mxu0 0.0
        %1557 = vmatpush1.msra.mxu0 0.0
        %1558 = vmatprep.subr.mxu0 0.0
        %1559 = vmatpush1.msra.mxu0 0.0
        %1560 = vmatprep.subr.mxu0 0.0
        %1561 = vmatpush1.msra.mxu0 0.0
        %1562 = vmatprep.subr.mxu0 0.0
        %1563 = vmatpush1.msra.mxu0 0.0
        %1564 = vmatprep.subr.mxu0 0.0
        %1565 = vmatpush1.msra.mxu0 0.0
        %1566 = vmatprep.subr.mxu0 0.0
        %1567 = vmatpush1.msra.mxu0 0.0
        %1568 = vmatprep.subr.mxu0 0.0
        %1569 = vmatpush1.msra.mxu0 0.0
        %1570 = vmatprep.subr.mxu0 0.0
        %1571 = vmatpush1.msra.mxu0 0.0
        %1572 = vmatprep.subr.mxu0 0.0
        %1573 = vmatpush1.msra.mxu0 0.0
        %1574 = vmatprep.subr.mxu0 0.0
        %1575 = vmatpush1.msra.mxu0 0.0
        %1576 = vmatprep.subr.mxu0 0.0
        %1577 = vmatpush1.msra.mxu0 0.0
        %1578 = vmatprep.subr.mxu0 0.0
        %1579 = vmatpush1.msra.mxu0 0.0
        %1580 = vmatprep.subr.mxu0 0.0
        %1581 = vmatpush1.msra.mxu0 0.0
        %1582 = vmatprep.subr.mxu0 0.0
        %1583 = vmatpush1.msra.mxu0 0.0
        %1584 = vmatprep.subr.mxu0 0.0
        %1585 = vmatpush1.msra.mxu0 0.0
        %1586 = vmatprep.subr.mxu0 0.0
        %1587 = vmatpush1.msra.mxu0 0.0
        %1588 = vmatprep.subr.mxu0 0.0
        %1589 = vmatpush1.msra.mxu0 0.0
        %1590 = vmatprep.subr.mxu0 0.0
        %1591 = vmatpush1.msra.mxu0 0.0
        %1592 = vmatprep.subr.mxu0 0.0
        %1593 = vmatpush1.msra.mxu0 0.0
        %1594 = vmatprep.subr.mxu0 0.0
        %1595 = vmatpush1.msra.mxu0 0.0
        %1596 = vmatprep.subr.mxu0 0.0
        %1597 = vmatpush1.msra.mxu0 0.0
        %1598 = vmatprep.subr.mxu0 0.0
        %1599 = vmatpush1.msra.mxu0 0.0
        %1600 = vmatprep.subr.mxu0 0.0
        %1601 = vmatpush1.msra.mxu0 0.0
        %1602 = vmatprep.mubr.f32.mxu0 0.0
        %v1603 = vand.u32 %v1358, 4294901760
        %v1604 = vsub.f32 %v1358, %v1603
        %1605 = vmatmul.mubr.f32.gmra.mrb[0].mxu0 %v1604
        %v1606 = vpop.f32.mrb[0].mxu0
        %v1607 = vadd.f32 %v1527, %v1606
        %v1608 = vpop.f32.mrb[0].mxu0
        %1609 = vdwg.mxu0
        %1610 = vmatprep.subr.mxu0 0.0
        %v1611 = vand.u32 %v879, 4294901760
        %1612 = vmatpush1.msra.mxu0 %v1611
        %1613 = vmatprep.subr.mxu0 0.0
        %v1614 = vand.u32 %v880, 4294901760
        %1615 = vmatpush1.msra.mxu0 %v1614
        %1616 = vmatprep.subr.mxu0 0.0
        %v1617 = vand.u32 %v881, 4294901760
        %1618 = vmatpush1.msra.mxu0 %v1617
        %1619 = vmatprep.subr.mxu0 0.0
        %v1620 = vand.u32 %v882, 4294901760
        %1621 = vmatpush1.msra.mxu0 %v1620
        %1622 = vmatprep.subr.mxu0 0.0
        %1623 = vmatpush1.msra.mxu0 0.0
        %1624 = vmatprep.subr.mxu0 0.0
        %1625 = vmatpush1.msra.mxu0 0.0
        %1626 = vmatprep.subr.mxu0 0.0
        %1627 = vmatpush1.msra.mxu0 0.0
        %1628 = vmatprep.subr.mxu0 0.0
        %1629 = vmatpush1.msra.mxu0 0.0
        %1630 = vmatprep.subr.mxu0 0.0
        %1631 = vmatpush1.msra.mxu0 0.0
        %1632 = vmatprep.subr.mxu0 0.0
        %1633 = vmatpush1.msra.mxu0 0.0
        %1634 = vmatprep.subr.mxu0 0.0
        %1635 = vmatpush1.msra.mxu0 0.0
        %1636 = vmatprep.subr.mxu0 0.0
        %1637 = vmatpush1.msra.mxu0 0.0
        %1638 = vmatprep.subr.mxu0 0.0
        %1639 = vmatpush1.msra.mxu0 0.0
        %1640 = vmatprep.subr.mxu0 0.0
        %1641 = vmatpush1.msra.mxu0 0.0
        %1642 = vmatprep.subr.mxu0 0.0
        %1643 = vmatpush1.msra.mxu0 0.0
        %1644 = vmatprep.subr.mxu0 0.0
        %1645 = vmatpush1.msra.mxu0 0.0
        %1646 = vmatprep.subr.mxu0 0.0
        %1647 = vmatpush1.msra.mxu0 0.0
        %1648 = vmatprep.subr.mxu0 0.0
        %1649 = vmatpush1.msra.mxu0 0.0
        %1650 = vmatprep.subr.mxu0 0.0
        %1651 = vmatpush1.msra.mxu0 0.0
        %1652 = vmatprep.subr.mxu0 0.0
        %1653 = vmatpush1.msra.mxu0 0.0
        %1654 = vmatprep.subr.mxu0 0.0
        %1655 = vmatpush1.msra.mxu0 0.0
        %1656 = vmatprep.subr.mxu0 0.0
        %1657 = vmatpush1.msra.mxu0 0.0
        %1658 = vmatprep.subr.mxu0 0.0
        %1659 = vmatpush1.msra.mxu0 0.0
        %1660 = vmatprep.subr.mxu0 0.0
        %1661 = vmatpush1.msra.mxu0 0.0
        %1662 = vmatprep.subr.mxu0 0.0
        %1663 = vmatpush1.msra.mxu0 0.0
        %1664 = vmatprep.subr.mxu0 0.0
        %1665 = vmatpush1.msra.mxu0 0.0
        %1666 = vmatprep.subr.mxu0 0.0
        %1667 = vmatpush1.msra.mxu0 0.0
        %1668 = vmatprep.subr.mxu0 0.0
        %1669 = vmatpush1.msra.mxu0 0.0
        %1670 = vmatprep.subr.mxu0 0.0
        %1671 = vmatpush1.msra.mxu0 0.0
        %1672 = vmatprep.subr.mxu0 0.0
        %1673 = vmatpush1.msra.mxu0 0.0
        %1674 = vmatprep.subr.mxu0 0.0
        %1675 = vmatpush1.msra.mxu0 0.0
        %1676 = vmatprep.subr.mxu0 0.0
        %1677 = vmatpush1.msra.mxu0 0.0
        %1678 = vmatprep.mubr.f32.mxu0 0.0
        %v1679 = vand.u32 %v1358, 4294901760
        %v1680 = vsub.f32 %v1358, %v1679
        %v1681 = vand.u32 %v1680, 4294901760
        %1682 = vmatmul.mubr.f32.gmra.mrb[0].mxu0 %v1681
        %v1683 = vpop.f32.mrb[0].mxu0
        %v1684 = vadd.f32 %v1607, %v1683
        %v1685 = vpop.f32.mrb[0].mxu0
        %1686 = vdwg.mxu0
        %1687 = vmatprep.subr.mxu0 0.0
        %v1688 = vand.u32 %v879, 4294901760
        %v1689 = vsub.f32 %v879, %v1688
        %v1690 = vand.u32 %v1689, 4294901760
        %1691 = vmatpush1.msra.mxu0 %v1690
        %1692 = vmatprep.subr.mxu0 0.0
        %v1693 = vand.u32 %v880, 4294901760
        %v1694 = vsub.f32 %v880, %v1693
        %v1695 = vand.u32 %v1694, 4294901760
        %1696 = vmatpush1.msra.mxu0 %v1695
        %1697 = vmatprep.subr.mxu0 0.0
        %v1698 = vand.u32 %v881, 4294901760
        %v1699 = vsub.f32 %v881, %v1698
        %v1700 = vand.u32 %v1699, 4294901760
        %1701 = vmatpush1.msra.mxu0 %v1700
        %1702 = vmatprep.subr.mxu0 0.0
        %v1703 = vand.u32 %v882, 4294901760
        %v1704 = vsub.f32 %v882, %v1703
        %v1705 = vand.u32 %v1704, 4294901760
        %1706 = vmatpush1.msra.mxu0 %v1705
        %1707 = vmatprep.subr.mxu0 0.0
        %1708 = vmatpush1.msra.mxu0 0.0
        %1709 = vmatprep.subr.mxu0 0.0
        %1710 = vmatpush1.msra.mxu0 0.0
        %1711 = vmatprep.subr.mxu0 0.0
        %1712 = vmatpush1.msra.mxu0 0.0
        %1713 = vmatprep.subr.mxu0 0.0
        %1714 = vmatpush1.msra.mxu0 0.0
        %1715 = vmatprep.subr.mxu0 0.0
        %1716 = vmatpush1.msra.mxu0 0.0
        %1717 = vmatprep.subr.mxu0 0.0
        %1718 = vmatpush1.msra.mxu0 0.0
        %1719 = vmatprep.subr.mxu0 0.0
        %1720 = vmatpush1.msra.mxu0 0.0
        %1721 = vmatprep.subr.mxu0 0.0
        %1722 = vmatpush1.msra.mxu0 0.0
        %1723 = vmatprep.subr.mxu0 0.0
        %1724 = vmatpush1.msra.mxu0 0.0
        %1725 = vmatprep.subr.mxu0 0.0
        %1726 = vmatpush1.msra.mxu0 0.0
        %1727 = vmatprep.subr.mxu0 0.0
        %1728 = vmatpush1.msra.mxu0 0.0
        %1729 = vmatprep.subr.mxu0 0.0
        %1730 = vmatpush1.msra.mxu0 0.0
        %1731 = vmatprep.subr.mxu0 0.0
        %1732 = vmatpush1.msra.mxu0 0.0
        %1733 = vmatprep.subr.mxu0 0.0
        %1734 = vmatpush1.msra.mxu0 0.0
        %1735 = vmatprep.subr.mxu0 0.0
        %1736 = vmatpush1.msra.mxu0 0.0
        %1737 = vmatprep.subr.mxu0 0.0
        %1738 = vmatpush1.msra.mxu0 0.0
        %1739 = vmatprep.subr.mxu0 0.0
        %1740 = vmatpush1.msra.mxu0 0.0
        %1741 = vmatprep.subr.mxu0 0.0
        %1742 = vmatpush1.msra.mxu0 0.0
        %1743 = vmatprep.subr.mxu0 0.0
        %1744 = vmatpush1.msra.mxu0 0.0
        %1745 = vmatprep.subr.mxu0 0.0
        %1746 = vmatpush1.msra.mxu0 0.0
        %1747 = vmatprep.subr.mxu0 0.0
        %1748 = vmatpush1.msra.mxu0 0.0
        %1749 = vmatprep.subr.mxu0 0.0
        %1750 = vmatpush1.msra.mxu0 0.0
        %1751 = vmatprep.subr.mxu0 0.0
        %1752 = vmatpush1.msra.mxu0 0.0
        %1753 = vmatprep.subr.mxu0 0.0
        %1754 = vmatpush1.msra.mxu0 0.0
        %1755 = vmatprep.subr.mxu0 0.0
        %1756 = vmatpush1.msra.mxu0 0.0
        %1757 = vmatprep.subr.mxu0 0.0
        %1758 = vmatpush1.msra.mxu0 0.0
        %1759 = vmatprep.subr.mxu0 0.0
        %1760 = vmatpush1.msra.mxu0 0.0
        %1761 = vmatprep.subr.mxu0 0.0
        %1762 = vmatpush1.msra.mxu0 0.0
        %1763 = vmatprep.mubr.f32.mxu0 0.0
        %v1764 = vand.u32 %v1358, 4294901760
        %1765 = vmatmul.mubr.f32.gmra.mrb[0].mxu0 %v1764
        %v1766 = vpop.f32.mrb[0].mxu0
        %v1767 = vadd.f32 %v1684, %v1766
        %v1768 = vpop.f32.mrb[0].mxu0
        %1769 = vdwg.mxu0
        %1770 = vmatprep.subr.mxu0 0.0
        %v1771 = vand.u32 %v879, 4294901760
        %1772 = vmatpush1.msra.mxu0 %v1771
        %1773 = vmatprep.subr.mxu0 0.0
        %v1774 = vand.u32 %v880, 4294901760
        %1775 = vmatpush1.msra.mxu0 %v1774
        %1776 = vmatprep.subr.mxu0 0.0
        %v1777 = vand.u32 %v881, 4294901760
        %1778 = vmatpush1.msra.mxu0 %v1777
        %1779 = vmatprep.subr.mxu0 0.0
        %v1780 = vand.u32 %v882, 4294901760
        %1781 = vmatpush1.msra.mxu0 %v1780
        %1782 = vmatprep.subr.mxu0 0.0
        %1783 = vmatpush1.msra.mxu0 0.0
        %1784 = vmatprep.subr.mxu0 0.0
        %1785 = vmatpush1.msra.mxu0 0.0
        %1786 = vmatprep.subr.mxu0 0.0
        %1787 = vmatpush1.msra.mxu0 0.0
        %1788 = vmatprep.subr.mxu0 0.0
        %1789 = vmatpush1.msra.mxu0 0.0
        %1790 = vmatprep.subr.mxu0 0.0
        %1791 = vmatpush1.msra.mxu0 0.0
        %1792 = vmatprep.subr.mxu0 0.0
        %1793 = vmatpush1.msra.mxu0 0.0
        %1794 = vmatprep.subr.mxu0 0.0
        %1795 = vmatpush1.msra.mxu0 0.0
        %1796 = vmatprep.subr.mxu0 0.0
        %1797 = vmatpush1.msra.mxu0 0.0
        %1798 = vmatprep.subr.mxu0 0.0
        %1799 = vmatpush1.msra.mxu0 0.0
        %1800 = vmatprep.subr.mxu0 0.0
        %1801 = vmatpush1.msra.mxu0 0.0
        %1802 = vmatprep.subr.mxu0 0.0
        %1803 = vmatpush1.msra.mxu0 0.0
        %1804 = vmatprep.subr.mxu0 0.0
        %1805 = vmatpush1.msra.mxu0 0.0
        %1806 = vmatprep.subr.mxu0 0.0
        %1807 = vmatpush1.msra.mxu0 0.0
        %1808 = vmatprep.subr.mxu0 0.0
        %1809 = vmatpush1.msra.mxu0 0.0
        %1810 = vmatprep.subr.mxu0 0.0
        %1811 = vmatpush1.msra.mxu0 0.0
        %1812 = vmatprep.subr.mxu0 0.0
        %1813 = vmatpush1.msra.mxu0 0.0
        %1814 = vmatprep.subr.mxu0 0.0
        %1815 = vmatpush1.msra.mxu0 0.0
        %1816 = vmatprep.subr.mxu0 0.0
        %1817 = vmatpush1.msra.mxu0 0.0
        %1818 = vmatprep.subr.mxu0 0.0
        %1819 = vmatpush1.msra.mxu0 0.0
        %1820 = vmatprep.subr.mxu0 0.0
        %1821 = vmatpush1.msra.mxu0 0.0
        %1822 = vmatprep.subr.mxu0 0.0
        %1823 = vmatpush1.msra.mxu0 0.0
        %1824 = vmatprep.subr.mxu0 0.0
        %1825 = vmatpush1.msra.mxu0 0.0
        %1826 = vmatprep.subr.mxu0 0.0
        %1827 = vmatpush1.msra.mxu0 0.0
        %1828 = vmatprep.subr.mxu0 0.0
        %1829 = vmatpush1.msra.mxu0 0.0
        %1830 = vmatprep.subr.mxu0 0.0
        %1831 = vmatpush1.msra.mxu0 0.0
        %1832 = vmatprep.subr.mxu0 0.0
        %1833 = vmatpush1.msra.mxu0 0.0
        %1834 = vmatprep.subr.mxu0 0.0
        %1835 = vmatpush1.msra.mxu0 0.0
        %1836 = vmatprep.subr.mxu0 0.0
        %1837 = vmatpush1.msra.mxu0 0.0
        %1838 = vmatprep.mubr.f32.mxu0 0.0
        %v1839 = vand.u32 %v1358, 4294901760
        %1840 = vmatmul.mubr.f32.gmra.mrb[0].mxu0 %v1839
        %v1841 = vpop.f32.mrb[0].mxu0
        %v1842 = vadd.f32 %v1767, %v1841
        %v1843 = vpop.f32.mrb[0].mxu0
        %1844 = vdwg.mxu0
        %v1845 = vadd.f32 %v1842, %v1346
        %1846 = vst.msk [vmem:[%s370] sm:$0xff] %vm1356, %v1845
        %s1847 = sand.u32 %s194, 1
        %s1848 = scalar_lea.sflag [#allocation5], %s1847
        %s1849 = sand.u32 %s194, 1
        %s1850 = smul.addr %s1849, 8
        %s1851 = scalar_lea.vmem [#allocation14], %s1850
        // Predicated region
        $region73: #{slr_adapter_forward.1} parent=43 // pred_check
          %p1852 = pneg %p204
        $region74: #{slr_adapter_forward.1} parent=43 // pred_check_branch
          %1854 = sbr.rel (%p1852) target = $region76
        $region75: #{slr_adapter_forward.1} parent=43 // pred_region
          %s1856 = ssub.s32 128, 128
          %1857 = vsyncadd %s1848, %s1856
          %s1858 = sadd.s32 %s31, %s30
          %s1859 = smul.addr %s1858, 128
          %s1860 = scalar_lea.hbm %s6, %s1859
          %s1862 = sshll.u32 %s1851, 4
          %s1863 = int_to_ptr.vmem [resolvable:$true] %s1862
          %1865 = dma.vmem_to_hbm [thread:$0]  %s1863, 128, %s1860, %s1848
        $region76: #{slr_adapter_forward.1} parent=43 // pred_fallthru
          _
      $region44: #{slr_adapter_forward.1} parent=5 // pred_fallthru
        _
      %p1866 = scmp.le.s32.totalorder 2, %s21
      // Predicated region
      $region77: #{slr_adapter_forward.1} parent=5 // pred_check
        %p1867 = pneg %p1866
      $region78: #{slr_adapter_forward.1} parent=5 // pred_check_branch
        %1869 = sbr.rel (%p1867) target = $region80
      $region79: #{slr_adapter_forward.1} parent=5 // pred_region
        %s1870 = ssub.s32 %s21, 2
        // Predicated region
        $region81: #{slr_adapter_forward.1} parent=79 // pred_check
          %p1871 = pneg %p210
        $region82: #{slr_adapter_forward.1} parent=79 // pred_check_branch
          %1873 = sbr.rel (%p1871) target = $region84
        $region83: #{slr_adapter_forward.1} parent=79 // pred_region
          %s1874 = sand.u32 %s195, 1
          %s1875 = scalar_lea.sflag [#allocation5], %s1874
          %s1876 = sand.u32 %s195, 1
          %s1877 = smul.addr %s1876, 8
          %s1878 = scalar_lea.vmem [#allocation14], %s1877
          %1879 = dma.done %s1875, 128
        $region84: #{slr_adapter_forward.1} parent=79 // pred_fallthru
          _
      $region80: #{slr_adapter_forward.1} parent=5 // pred_fallthru
        _
    $region6: #{slr_adapter_forward.1} parent=1 // loop_footer
      %s25 = sadd.s32 1, %s21
    $region7: #{slr_adapter_forward.1} parent=1 // loop_footer_branch
      %20 = sbr.rel target = $region3
    $region8: #{slr_adapter_forward.1} parent=1 // loop_exit
      _
    %1880 = vsyncpa [#allocation4], 1
    %s1881 = scalar_lea.sflag [#allocation4], 1
    %1882 = vsyncpa %s1881, 1
    %1883 = vsyncpa [#allocation7], 1
    %1884 = vsyncpa [#allocation10], 1
    %1885 = vsyncpa [#allocation13], 1
    %1886 = vsyncpa [#allocation5], 1
    %s1887 = scalar_lea.sflag [#allocation5], 1
    %1888 = vsyncpa %s1887, 1

</llo_original>
